<compile_context>
chip_gen: v6e
topology: v6e:2x2x1
jax: 0.10.0
libtpu: 0.0.40
codegen_flags: <defaults>
</compile_context>

<pallas_src>
import jax
import jax.numpy as jnp
from jax.experimental import pallas as pl
from jax.experimental.pallas import tpu as pltpu


# --------------------------------------------------------------------------
# Pallas kernel: one (batch, HW-tile) step of the OCR forward.
# --------------------------------------------------------------------------
def _ocr_kernel(x_ref, kT_ref, v_ref,
                wp1_ref, bp1_ref, wp2_ref, bp2_ref,   # f_pixel  (2x conv-bn-relu)
                wu_ref, bu_ref,                        # f_up     (1x conv-bn-relu)
                wfc_ref, wfx_ref, bf_ref,              # final conv_bn (split over concat)
                o_ref):
    f32 = jnp.float32
    bf16 = jnp.bfloat16

    def cbr(w_ref, b_ref, act_bf16):
        # 1x1 conv + folded BN + ReLU, channels-first: relu(W @ act + b) -> bf16
        y = jnp.dot(w_ref[...], act_bf16, preferred_element_type=f32) + b_ref[...]
        return jnp.maximum(y, 0.0).astype(bf16)

    xT = x_ref[0]                                       # (C, THW) bf16

    # f_pixel(x) -> query: (Kc, THW), bf16 intermediates
    qT = cbr(wp2_ref, bp2_ref, cbr(wp1_ref, bp1_ref, xT))

    kT = kT_ref[0]                                      # (M, Kc) bf16, pre-scaled by Kc**-0.5
    vT = v_ref[0]                                       # (Kc, M) bf16

    # simT[m, hw] = sum_kc k[m, kc] * q[kc, hw] -> (M, THW); softmax over sublane axis M
    simT = jnp.dot(kT, qT, preferred_element_type=f32)
    simT = simT - jnp.max(simT, axis=0, keepdims=True)
    e = jnp.exp(simT)
    attnT = (e * pl.reciprocal(jnp.sum(e, axis=0, keepdims=True), approx=True)).astype(bf16)

    # context^T = V @ attn^T : (Kc, THW)
    ctxT = jnp.dot(vT, attnT, preferred_element_type=f32).astype(bf16)

    # f_up(context) : (C, THW)
    ctx_upT = cbr(wu_ref, bu_ref, ctxT)

    # conv_bn(concat([context, feats], channel)) split into two matmuls.
    outT = (jnp.dot(wfc_ref[...], ctx_upT, preferred_element_type=f32)
            + jnp.dot(wfx_ref[...], xT, preferred_element_type=f32)
            + bf_ref[...])
    o_ref[0] = jnp.maximum(outT, 0.0).astype(o_ref.dtype)


# --------------------------------------------------------------------------
# VMEM budgeting helpers
# --------------------------------------------------------------------------
def _round_up(x, m):
    return -(-x // m) * m


def _tile_bytes(rows, cols, itemsize):
    # VMEM tiles pad the last two dims to (8, 128).
    return _round_up(max(int(rows), 1), 8) * _round_up(max(int(cols), 1), 128) * itemsize


def _vmem_capacity_bytes():
    try:
        cap = getattr(pltpu.get_tpu_info(), "vmem_capacity_bytes", None)
        if cap:
            return int(cap)
    except Exception:
        pass
    return 64 * 1024 * 1024   # conservative default (v7x per-TensorCore VMEM)


def _step_vmem_bytes(thw, C, Kc, Cout, M, out_itemsize, weight_shapes):
    b = 0
    # pipeline (double-)buffers for the auto-DMA'd operands
    b += 2 * _tile_bytes(C, thw, 2)                            # feats tile (bf16)
    b += 2 * _tile_bytes(Cout, thw, out_itemsize)              # output tile
    b += 2 * (_tile_bytes(M, Kc, 2) + _tile_bytes(Kc, M, 2))   # key^T / value
    for (r, c), isz in weight_shapes:                          # weights/biases (conservatively x2)
        b += 2 * _tile_bytes(r, c, isz)
    # in-kernel temporaries (bf16 activations + f32 accumulators)
    b += 2 * _tile_bytes(Kc, thw, 2)                           # q1, qT bf16
    b += 2 * _tile_bytes(M, thw, 4) + _tile_bytes(M, thw, 2)   # sim/exp f32, attn bf16
    b += _tile_bytes(Kc, thw, 4) + _tile_bytes(Kc, thw, 2)     # ctx f32 + bf16
    b += _tile_bytes(C, thw, 2)                                # ctx_up bf16
    b += _tile_bytes(Cout, thw, 4)                             # out accumulator f32
    return int(1.15 * b)                                       # headroom for spills/semaphores


# --------------------------------------------------------------------------
# Host wrapper
# --------------------------------------------------------------------------
def spatial_ocr_forward(feats_nchw, proxy_nchw, params, key_channels, *,
                        thw=None, out_dtype=None):
    N, C, H, W = feats_nchw.shape
    _, _, Hp, Wp = proxy_nchw.shape
    HW, M = H * W, Hp * Wp
    Kc = key_channels
    Cout = params["wf_x"].shape[0]
    out_dtype = feats_nchw.dtype if out_dtype is None else out_dtype
    bf16 = jnp.bfloat16

    # channels-first + spatially flattened: pure reshapes, no HBM transposes.
    x = feats_nchw.reshape(N, C, HW).astype(bf16)
    p = proxy_nchw.reshape(N, C, M).astype(bf16)

    # ---- key/value hoisted out of the kernel (tiny: O(C*Kc*M)) --------------
    def host_cbr(w, b, act, scale=None):
        y = jnp.einsum("oc,ncm->nom", w, act, preferred_element_type=jnp.float32)
        y = jnp.maximum(y + b[None], 0.0)
        if scale is not None:
            y = y * scale
        return y.astype(bf16)

    inv_sqrt_kc = float(key_channels) ** -0.5
    k = host_cbr(params["wo2"], params["bo2"],
                 host_cbr(params["wo1"], params["bo1"], p),
                 scale=inv_sqrt_kc)                     # (N, Kc, M), pre-scaled by Kc**-0.5
    kT = jnp.swapaxes(k, 1, 2)                          # (N, M, Kc)  pre-transposed key
    v = host_cbr(params["wd"], params["bd"], p)         # (N, Kc, M)

    param_order = ["wp1", "bp1", "wp2", "bp2", "wu", "bu", "wf_ctx", "wf_x", "bf"]
    flat_params = [params[kname] for kname in param_order]
    weight_shapes = [(pp.shape, pp.dtype.itemsize) for pp in flat_params]

    # ---- VMEM-budget-aware HW tile + explicit scoped-VMEM limit -------------
    vmem_cap = _vmem_capacity_bytes()
    vmem_limit = int(vmem_cap * 0.85)
    out_isz = jnp.dtype(out_dtype).itemsize
    if thw is None:
        budget = int(vmem_cap * 0.6)
        # prefer the whole map (grid collapses to (N,1)), then big lane-dense divisors
        cands = [HW] + [c for c in (4096, 2048, 1024, 512, 256, 128)
                        if c < HW and HW % c == 0]
        thw = cands[-1]
        for cand in cands:
            if _step_vmem_bytes(cand, C, Kc, Cout, M, out_isz, weight_shapes) <= budget:
                thw = cand
                break
    assert HW % thw == 0, "HW must be divisible by the HW tile size"
    n_hw = HW // thw

    def run(weight_mode):
        def w_spec(arr):
            if weight_mode is None:
                return pl.BlockSpec(arr.shape, lambda b, t: (0, 0))
            return pl.BlockSpec(arr.shape, lambda b, t: (0, 0),
                                pipeline_mode=weight_mode)

        return pl.pallas_call(
            _ocr_kernel,
            out_shape=jax.ShapeDtypeStruct((N, Cout, HW), out_dtype),
            grid=(N, n_hw),
            in_specs=[
                pl.BlockSpec((1, C, thw), lambda b, t: (b, 0, t)),   # feats tile
                pl.BlockSpec((1, M, Kc), lambda b, t: (b, 0, 0)),    # key^T (per batch)
                pl.BlockSpec((1, Kc, M), lambda b, t: (b, 0, 0)),    # value (per batch)
            ] + [w_spec(pp) for pp in flat_params],
            out_specs=pl.BlockSpec((1, Cout, thw), lambda b, t: (b, 0, t)),
            compiler_params=pltpu.CompilerParams(
                # no carried state -> both axes megacore-shardable
                dimension_semantics=("parallel", "parallel"),
                vmem_limit_bytes=vmem_limit),
        )(x, kT, v, *flat_params)

    try:
        # resident constants single-buffered (recovers weight VMEM, esp. on v7x)
        out = run(pl.Buffered(1))
    except Exception:
        # TODO(synk): remove fallback once Buffered(1) on constant blocks is universal.
        out = run(None)

    # (N, Cout, HW) -> NCHW is a free reshape.
    return out.reshape(N, Cout, H, W)


# --------------------------------------------------------------------------
# Deterministic parameter construction (conv weights + BN stats, BN folded).
# Weights stored (Cout, Cin) in bf16 (MXU-native); biases (Cout, 1) in f32.
# --------------------------------------------------------------------------
def _fold_conv_bn(w, gamma, beta, mean, var, eps=1e-5):
    s = gamma / jnp.sqrt(var + eps)
    w_eff = (w * s[:, None]).astype(jnp.bfloat16)               # (Cout, Cin)
    b_eff = ((beta - mean * s)[:, None]).astype(jnp.float32)    # (Cout, 1)
    return w_eff, b_eff


def make_params(key, in_channels, key_channels, out_channels):
    def conv_bn(key, cin, cout):
        kw, kg, kb, km, kv = jax.random.split(key, 5)
        w = jax.random.normal(kw, (cout, cin), jnp.float32) * (cin ** -0.5)
        gamma = 1.0 + 0.1 * jax.random.normal(kg, (cout,), jnp.float32)
        beta = 0.1 * jax.random.normal(kb, (cout,), jnp.float32)
        mean = 0.1 * jax.random.normal(km, (cout,), jnp.float32)
        var = 1.0 + 0.1 * jnp.abs(jax.random.normal(kv, (cout,), jnp.float32))
        return _fold_conv_bn(w, gamma, beta, mean, var)

    keys = jax.random.split(key, 7)
    wp1, bp1 = conv_bn(keys[0], in_channels, key_channels)
    wp2, bp2 = conv_bn(keys[1], key_channels, key_channels)
    wo1, bo1 = conv_bn(keys[2], in_channels, key_channels)
    wo2, bo2 = conv_bn(keys[3], key_channels, key_channels)
    wd, bd = conv_bn(keys[4], in_channels, key_channels)
    wu, bu = conv_bn(keys[5], key_channels, in_channels)
    # final 1x1 conv over concat([context, feats]) -> split over the Cin axis.
    wf, bf = conv_bn(keys[6], 2 * in_channels, out_channels)
    wf_ctx, wf_x = wf[:, :in_channels], wf[:, in_channels:]
    return dict(wp1=wp1, bp1=bp1, wp2=wp2, bp2=bp2,
                wo1=wo1, bo1=bo1, wo2=wo2, bo2=bo2,
                wd=wd, bd=bd, wu=wu, bu=bu,
                wf_ctx=wf_ctx, wf_x=wf_x, bf=bf)


# --------------------------------------------------------------------------
# Pure-JAX f32 reference (same bf16-stored weights, f32 compute).
# --------------------------------------------------------------------------
def reference_forward(feats_nchw, proxy_nchw, params, key_channels):
    N, C, H, W = feats_nchw.shape
    _, _, Hp, Wp = proxy_nchw.shape
    f32 = jnp.float32
    x = feats_nchw.reshape(N, C, H * W).astype(f32)        # (N, C, HW)
    p = proxy_nchw.reshape(N, C, Hp * Wp).astype(f32)      # (N, C, M)
    relu = lambda t: jnp.maximum(t, 0.0)

    def cbr(w, b, t):
        return relu(jnp.einsum("oc,ncs->nos", w.astype(f32), t) + b[None])

    q = cbr(params["wp2"], params["bp2"], cbr(params["wp1"], params["bp1"], x))   # (N, Kc, HW)
    k = cbr(params["wo2"], params["bo2"], cbr(params["wo1"], params["bo1"], p))   # (N, Kc, M)
    v = cbr(params["wd"], params["bd"], p)                                        # (N, Kc, M)
    sim = jnp.einsum("nkq,nkm->nqm", q, k) * (float(key_channels) ** -0.5)        # (N, HW, M)
    attn = jax.nn.softmax(sim, axis=-1)
    ctx = jnp.einsum("nqm,nkm->nkq", attn, v)                                     # (N, Kc, HW)
    ctx_up = cbr(params["wu"], params["bu"], ctx)                                 # (N, C, HW)
    out = relu(jnp.einsum("oc,ncs->nos", params["wf_ctx"].astype(f32), ctx_up)
               + jnp.einsum("oc,ncs->nos", params["wf_x"].astype(f32), x)
               + params["bf"][None])                                              # (N, Cout, HW)
    Cout = out.shape[1]
    return out.reshape(N, Cout, H, W)


if __name__ == "__main__":
    N, C, H, W = 2, 32, 16, 16          # in_channels = 32
    Kc, Cout = 16, 32                   # key_channels = 16, out_channels = 32
    Hp, Wp = 8, 1                       # proxy: 8 object regions

    root = jax.random.PRNGKey(0)
    k_feats, k_proxy, k_params = jax.random.split(root, 3)
    feats = jax.random.normal(k_feats, (N, C, H, W), jnp.float32)
    proxy = jax.random.normal(k_proxy, (N, C, Hp, Wp), jnp.float32)
    params = make_params(k_params, C, Kc, Cout)

    ref = jax.block_until_ready(reference_forward(feats, proxy, params, Kc))

    # Default path: VMEM-aware thw -> thw = HW = 256, grid (N, 1) (small-map fast path).
    out = jax.block_until_ready(spatial_ocr_forward(feats, proxy, params, Kc))
    assert out.shape == (N, Cout, H, W)
    # bf16 MXU operands + approx reciprocal softmax vs f32 reference -> relaxed tolerance.
    assert jnp.allclose(out, ref, atol=5e-2, rtol=5e-2), \
        f"default-path mismatch (max abs err {float(jnp.max(jnp.abs(out - ref)))})"

    # Tiled path: thw=128 -> grid (N, 2); exercises the HW pipeline, both axes parallel.
    out_t = jax.block_until_ready(spatial_ocr_forward(feats, proxy, params, Kc, thw=128))
    assert jnp.allclose(out_t, ref, atol=5e-2, rtol=5e-2), \
        f"tiled-path mismatch (max abs err {float(jnp.max(jnp.abs(out_t - ref)))})"

    print("KERNEL_OK")
</pallas_src>

<mosaic_0001>
module attributes {stable_mosaic.version = 11 : i64} {
  func.func @_ocr_kernel(%arg0: i32, %arg1: i32, %arg2: memref<1x32x256xbf16, #tpu.memory_space<vmem>>, %arg3: memref<1x8x16xbf16, #tpu.memory_space<vmem>>, %arg4: memref<1x16x8xbf16, #tpu.memory_space<vmem>>, %arg5: memref<16x32xbf16, #tpu.memory_space<vmem>>, %arg6: memref<16x1xf32, #tpu.memory_space<vmem>>, %arg7: memref<16x16xbf16, #tpu.memory_space<vmem>>, %arg8: memref<16x1xf32, #tpu.memory_space<vmem>>, %arg9: memref<32x16xbf16, #tpu.memory_space<vmem>>, %arg10: memref<32x1xf32, #tpu.memory_space<vmem>>, %arg11: memref<32x32xbf16, #tpu.memory_space<vmem>>, %arg12: memref<32x32xbf16, #tpu.memory_space<vmem>>, %arg13: memref<32x1xf32, #tpu.memory_space<vmem>>, %arg14: memref<1x32x256xf32, #tpu.memory_space<vmem>>) attributes {dimension_semantics = [#tpu.dimension_semantics<parallel>, #tpu.dimension_semantics<parallel>], iteration_bounds = array<i64: 2, 1>, scalar_prefetch = 0 : i64, scratch_operands = 0 : i64, tpu.core_type = #tpu.core_type<tc>, window_params = [{transform_indices = @transform_0, window_bounds = array<i64: 1, 32, 256>}, {transform_indices = @transform_1, window_bounds = array<i64: 1, 8, 16>}, {transform_indices = @transform_2, window_bounds = array<i64: 1, 16, 8>}, {pipeline_mode = #tpu.pipeline_mode<synchronous>, transform_indices = @transform_3, window_bounds = array<i64: 16, 32>}, {pipeline_mode = #tpu.pipeline_mode<synchronous>, transform_indices = @transform_4, window_bounds = array<i64: 16, 1>}, {pipeline_mode = #tpu.pipeline_mode<synchronous>, transform_indices = @transform_5, window_bounds = array<i64: 16, 16>}, {pipeline_mode = #tpu.pipeline_mode<synchronous>, transform_indices = @transform_6, window_bounds = array<i64: 16, 1>}, {pipeline_mode = #tpu.pipeline_mode<synchronous>, transform_indices = @transform_7, window_bounds = array<i64: 32, 16>}, {pipeline_mode = #tpu.pipeline_mode<synchronous>, transform_indices = @transform_8, window_bounds = array<i64: 32, 1>}, {pipeline_mode = #tpu.pipeline_mode<synchronous>, transform_indices = @transform_9, window_bounds = array<i64: 32, 32>}, {pipeline_mode = #tpu.pipeline_mode<synchronous>, transform_indices = @transform_10, window_bounds = array<i64: 32, 32>}, {pipeline_mode = #tpu.pipeline_mode<synchronous>, transform_indices = @transform_11, window_bounds = array<i64: 32, 1>}, {transform_indices = @transform_12, window_bounds = array<i64: 1, 32, 256>}]} {
    %c0 = arith.constant 0 : index
    %c0_0 = arith.constant 0 : index
    %c0_1 = arith.constant 0 : index
    %0 = vector.load %arg2[%c0, %c0_0, %c0_1] : memref<1x32x256xbf16, #tpu.memory_space<vmem>>, vector<1x32x256xbf16>
    %1 = vector.shape_cast %0 : vector<1x32x256xbf16> to vector<32x256xbf16>
    %c0_2 = arith.constant 0 : index
    %c0_3 = arith.constant 0 : index
    %2 = vector.load %arg5[%c0_2, %c0_3] : memref<16x32xbf16, #tpu.memory_space<vmem>>, vector<16x32xbf16>
    %cst = arith.constant dense<0.000000e+00> : vector<16x256xf32>
    %3 = tpu.matmul %2, %1, %cst {dimension_numbers = #tpu.dot_dimension_numbers<[1], [0], [0], [1], [0, 0, 1, 1], [], []>} : vector<16x32xbf16>, vector<32x256xbf16>, vector<16x256xf32> -> vector<16x256xf32>
    %c0_4 = arith.constant 0 : index
    %c0_5 = arith.constant 0 : index
    %4 = vector.load %arg6[%c0_4, %c0_5] : memref<16x1xf32, #tpu.memory_space<vmem>>, vector<16x1xf32>
    %5 = vector.broadcast %4 : vector<16x1xf32> to vector<16x256xf32>
    %6 = arith.addf %3, %5 : vector<16x256xf32>
    %cst_6 = arith.constant 0.000000e+00 : f32
    %7 = vector.broadcast %cst_6 : f32 to vector<16x256xf32>
    %8 = arith.maximumf %6, %7 : vector<16x256xf32>
    %9 = arith.truncf %8 : vector<16x256xf32> to vector<16x256xbf16>
    %c0_7 = arith.constant 0 : index
    %c0_8 = arith.constant 0 : index
    %10 = vector.load %arg7[%c0_7, %c0_8] : memref<16x16xbf16, #tpu.memory_space<vmem>>, vector<16x16xbf16>
    %cst_9 = arith.constant dense<0.000000e+00> : vector<16x256xf32>
    %11 = tpu.matmul %10, %9, %cst_9 {dimension_numbers = #tpu.dot_dimension_numbers<[1], [0], [0], [1], [0, 0, 1, 1], [], []>} : vector<16x16xbf16>, vector<16x256xbf16>, vector<16x256xf32> -> vector<16x256xf32>
    %c0_10 = arith.constant 0 : index
    %c0_11 = arith.constant 0 : index
    %12 = vector.load %arg8[%c0_10, %c0_11] : memref<16x1xf32, #tpu.memory_space<vmem>>, vector<16x1xf32>
    %13 = vector.broadcast %12 : vector<16x1xf32> to vector<16x256xf32>
    %14 = arith.addf %11, %13 : vector<16x256xf32>
    %cst_12 = arith.constant 0.000000e+00 : f32
    %15 = vector.broadcast %cst_12 : f32 to vector<16x256xf32>
    %16 = arith.maximumf %14, %15 : vector<16x256xf32>
    %17 = arith.truncf %16 : vector<16x256xf32> to vector<16x256xbf16>
    %c0_13 = arith.constant 0 : index
    %c0_14 = arith.constant 0 : index
    %c0_15 = arith.constant 0 : index
    %18 = vector.load %arg3[%c0_13, %c0_14, %c0_15] : memref<1x8x16xbf16, #tpu.memory_space<vmem>>, vector<1x8x16xbf16>
    %19 = vector.shape_cast %18 : vector<1x8x16xbf16> to vector<8x16xbf16>
    %c0_16 = arith.constant 0 : index
    %c0_17 = arith.constant 0 : index
    %c0_18 = arith.constant 0 : index
    %20 = vector.load %arg4[%c0_16, %c0_17, %c0_18] : memref<1x16x8xbf16, #tpu.memory_space<vmem>>, vector<1x16x8xbf16>
    %21 = vector.shape_cast %20 : vector<1x16x8xbf16> to vector<16x8xbf16>
    %cst_19 = arith.constant dense<0.000000e+00> : vector<8x256xf32>
    %22 = tpu.matmul %19, %17, %cst_19 {dimension_numbers = #tpu.dot_dimension_numbers<[1], [0], [0], [1], [0, 0, 1, 1], [], []>} : vector<8x16xbf16>, vector<16x256xbf16>, vector<8x256xf32> -> vector<8x256xf32>
    %cst_20 = arith.constant dense<0xFF800000> : vector<256xf32>
    %23 = vector.multi_reduction <maximumf>, %22, %cst_20 [0] : vector<8x256xf32> to vector<256xf32>
    %24 = vector.shape_cast %23 : vector<256xf32> to vector<1x256xf32>
    %25 = vector.broadcast %24 : vector<1x256xf32> to vector<8x256xf32>
    %26 = arith.subf %22, %25 : vector<8x256xf32>
    %27 = math.exp %26 : vector<8x256xf32>
    %cst_21 = arith.constant dense<0.000000e+00> : vector<256xf32>
    %28 = vector.multi_reduction <add>, %27, %cst_21 [0] : vector<8x256xf32> to vector<256xf32>
    %29 = vector.shape_cast %28 : vector<256xf32> to vector<1x256xf32>
    %30 = tpu.reciprocal %29 {approx = true} : vector<1x256xf32> -> vector<1x256xf32>
    %31 = vector.broadcast %30 : vector<1x256xf32> to vector<8x256xf32>
    %32 = arith.mulf %27, %31 : vector<8x256xf32>
    %33 = arith.truncf %32 : vector<8x256xf32> to vector<8x256xbf16>
    %cst_22 = arith.constant dense<0.000000e+00> : vector<16x256xf32>
    %34 = tpu.matmul %21, %33, %cst_22 {dimension_numbers = #tpu.dot_dimension_numbers<[1], [0], [0], [1], [0, 0, 1, 1], [], []>} : vector<16x8xbf16>, vector<8x256xbf16>, vector<16x256xf32> -> vector<16x256xf32>
    %35 = arith.truncf %34 : vector<16x256xf32> to vector<16x256xbf16>
    %c0_23 = arith.constant 0 : index
    %c0_24 = arith.constant 0 : index
    %36 = vector.load %arg9[%c0_23, %c0_24] : memref<32x16xbf16, #tpu.memory_space<vmem>>, vector<32x16xbf16>
    %cst_25 = arith.constant dense<0.000000e+00> : vector<32x256xf32>
    %37 = tpu.matmul %36, %35, %cst_25 {dimension_numbers = #tpu.dot_dimension_numbers<[1], [0], [0], [1], [0, 0, 1, 1], [], []>} : vector<32x16xbf16>, vector<16x256xbf16>, vector<32x256xf32> -> vector<32x256xf32>
    %c0_26 = arith.constant 0 : index
    %c0_27 = arith.constant 0 : index
    %38 = vector.load %arg10[%c0_26, %c0_27] : memref<32x1xf32, #tpu.memory_space<vmem>>, vector<32x1xf32>
    %39 = vector.broadcast %38 : vector<32x1xf32> to vector<32x256xf32>
    %40 = arith.addf %37, %39 : vector<32x256xf32>
    %cst_28 = arith.constant 0.000000e+00 : f32
    %41 = vector.broadcast %cst_28 : f32 to vector<32x256xf32>
    %42 = arith.maximumf %40, %41 : vector<32x256xf32>
    %43 = arith.truncf %42 : vector<32x256xf32> to vector<32x256xbf16>
    %c0_29 = arith.constant 0 : index
    %c0_30 = arith.constant 0 : index
    %44 = vector.load %arg11[%c0_29, %c0_30] : memref<32x32xbf16, #tpu.memory_space<vmem>>, vector<32x32xbf16>
    %cst_31 = arith.constant dense<0.000000e+00> : vector<32x256xf32>
    %45 = tpu.matmul %44, %43, %cst_31 {dimension_numbers = #tpu.dot_dimension_numbers<[1], [0], [0], [1], [0, 0, 1, 1], [], []>} : vector<32x32xbf16>, vector<32x256xbf16>, vector<32x256xf32> -> vector<32x256xf32>
    %c0_32 = arith.constant 0 : index
    %c0_33 = arith.constant 0 : index
    %46 = vector.load %arg12[%c0_32, %c0_33] : memref<32x32xbf16, #tpu.memory_space<vmem>>, vector<32x32xbf16>
    %cst_34 = arith.constant dense<0.000000e+00> : vector<32x256xf32>
    %47 = tpu.matmul %46, %1, %cst_34 {dimension_numbers = #tpu.dot_dimension_numbers<[1], [0], [0], [1], [0, 0, 1, 1], [], []>} : vector<32x32xbf16>, vector<32x256xbf16>, vector<32x256xf32> -> vector<32x256xf32>
    %48 = arith.addf %45, %47 : vector<32x256xf32>
    %c0_35 = arith.constant 0 : index
    %c0_36 = arith.constant 0 : index
    %49 = vector.load %arg13[%c0_35, %c0_36] : memref<32x1xf32, #tpu.memory_space<vmem>>, vector<32x1xf32>
    %50 = vector.broadcast %49 : vector<32x1xf32> to vector<32x256xf32>
    %51 = arith.addf %48, %50 : vector<32x256xf32>
    %cst_37 = arith.constant 0.000000e+00 : f32
    %52 = vector.broadcast %cst_37 : f32 to vector<32x256xf32>
    %53 = arith.maximumf %51, %52 : vector<32x256xf32>
    %c0_38 = arith.constant 0 : index
    %c0_39 = arith.constant 0 : index
    %c0_40 = arith.constant 0 : index
    %54 = vector.load %arg14[%c0_38, %c0_39, %c0_40] : memref<1x32x256xf32, #tpu.memory_space<vmem>>, vector<1x32x256xf32>
    %55 = vector.shape_cast %54 : vector<1x32x256xf32> to vector<32x256xf32>
    %56 = vector.shape_cast %53 : vector<32x256xf32> to vector<1x32x256xf32>
    tpu.vector_store %arg14[%c0_38, %c0_39, %c0_40], %56 {strides = array<i32>} : memref<1x32x256xf32, #tpu.memory_space<vmem>>, vector<1x32x256xf32>,
    return
  }
  func.func @transform_0(%arg0: i32, %arg1: i32) -> (i32, i32, i32) {
    %c0_i32 = arith.constant 0 : i32
    %c0_i32_0 = arith.constant 0 : i32
    return %arg0, %c0_i32, %arg1 : i32, i32, i32
  }
  func.func @transform_1(%arg0: i32, %arg1: i32) -> (i32, i32, i32) {
    %c0_i32 = arith.constant 0 : i32
    %c0_i32_0 = arith.constant 0 : i32
    %c0_i32_1 = arith.constant 0 : i32
    return %arg0, %c0_i32, %c0_i32_0 : i32, i32, i32
  }
  func.func @transform_2(%arg0: i32, %arg1: i32) -> (i32, i32, i32) {
    %c0_i32 = arith.constant 0 : i32
    %c0_i32_0 = arith.constant 0 : i32
    %c0_i32_1 = arith.constant 0 : i32
    return %arg0, %c0_i32, %c0_i32_0 : i32, i32, i32
  }
  func.func @transform_3(%arg0: i32, %arg1: i32) -> (i32, i32) {
    %c0_i32 = arith.constant 0 : i32
    %c0_i32_0 = arith.constant 0 : i32
    %c0_i32_1 = arith.constant 0 : i32
    return %c0_i32, %c0_i32_0 : i32, i32
  }
  func.func @transform_4(%arg0: i32, %arg1: i32) -> (i32, i32) {
    %c0_i32 = arith.constant 0 : i32
    %c0_i32_0 = arith.constant 0 : i32
    %c0_i32_1 = arith.constant 0 : i32
    return %c0_i32, %c0_i32_0 : i32, i32
  }
  func.func @transform_5(%arg0: i32, %arg1: i32) -> (i32, i32) {
    %c0_i32 = arith.constant 0 : i32
    %c0_i32_0 = arith.constant 0 : i32
    %c0_i32_1 = arith.constant 0 : i32
    return %c0_i32, %c0_i32_0 : i32, i32
  }
  func.func @transform_6(%arg0: i32, %arg1: i32) -> (i32, i32) {
    %c0_i32 = arith.constant 0 : i32
    %c0_i32_0 = arith.constant 0 : i32
    %c0_i32_1 = arith.constant 0 : i32
    return %c0_i32, %c0_i32_0 : i32, i32
  }
  func.func @transform_7(%arg0: i32, %arg1: i32) -> (i32, i32) {
    %c0_i32 = arith.constant 0 : i32
    %c0_i32_0 = arith.constant 0 : i32
    %c0_i32_1 = arith.constant 0 : i32
    return %c0_i32, %c0_i32_0 : i32, i32
  }
  func.func @transform_8(%arg0: i32, %arg1: i32) -> (i32, i32) {
    %c0_i32 = arith.constant 0 : i32
    %c0_i32_0 = arith.constant 0 : i32
    %c0_i32_1 = arith.constant 0 : i32
    return %c0_i32, %c0_i32_0 : i32, i32
  }
  func.func @transform_9(%arg0: i32, %arg1: i32) -> (i32, i32) {
    %c0_i32 = arith.constant 0 : i32
    %c0_i32_0 = arith.constant 0 : i32
    %c0_i32_1 = arith.constant 0 : i32
    return %c0_i32, %c0_i32_0 : i32, i32
  }
  func.func @transform_10(%arg0: i32, %arg1: i32) -> (i32, i32) {
    %c0_i32 = arith.constant 0 : i32
    %c0_i32_0 = arith.constant 0 : i32
    %c0_i32_1 = arith.constant 0 : i32
    return %c0_i32, %c0_i32_0 : i32, i32
  }
  func.func @transform_11(%arg0: i32, %arg1: i32) -> (i32, i32) {
    %c0_i32 = arith.constant 0 : i32
    %c0_i32_0 = arith.constant 0 : i32
    %c0_i32_1 = arith.constant 0 : i32
    return %c0_i32, %c0_i32_0 : i32, i32
  }
  func.func @transform_12(%arg0: i32, %arg1: i32) -> (i32, i32, i32) {
    %c0_i32 = arith.constant 0 : i32
    %c0_i32_0 = arith.constant 0 : i32
    return %arg0, %c0_i32, %arg1 : i32, i32, i32
  }
}

module attributes {stable_mosaic.version = 11 : i64} {
  func.func @_ocr_kernel(%arg0: i32, %arg1: i32, %arg2: memref<1x32x256xbf16, #tpu.memory_space<vmem>>, %arg3: memref<1x8x16xbf16, #tpu.memory_space<vmem>>, %arg4: memref<1x16x8xbf16, #tpu.memory_space<vmem>>, %arg5: memref<16x32xbf16, #tpu.memory_space<vmem>>, %arg6: memref<16x1xf32, #tpu.memory_space<vmem>>, %arg7: memref<16x16xbf16, #tpu.memory_space<vmem>>, %arg8: memref<16x1xf32, #tpu.memory_space<vmem>>, %arg9: memref<32x16xbf16, #tpu.memory_space<vmem>>, %arg10: memref<32x1xf32, #tpu.memory_space<vmem>>, %arg11: memref<32x32xbf16, #tpu.memory_space<vmem>>, %arg12: memref<32x32xbf16, #tpu.memory_space<vmem>>, %arg13: memref<32x1xf32, #tpu.memory_space<vmem>>, %arg14: memref<1x32x256xf32, #tpu.memory_space<vmem>>) attributes {dimension_semantics = [#tpu.dimension_semantics<parallel>, #tpu.dimension_semantics<parallel>], iteration_bounds = array<i64: 2, 1>, scalar_prefetch = 0 : i64, scratch_operands = 0 : i64, tpu.core_type = #tpu.core_type<tc>, window_params = [{transform_indices = @transform_0, window_bounds = array<i64: 1, 32, 256>}, {transform_indices = @transform_1, window_bounds = array<i64: 1, 8, 16>}, {transform_indices = @transform_2, window_bounds = array<i64: 1, 16, 8>}, {pipeline_mode = #tpu.pipeline_mode<synchronous>, transform_indices = @transform_3, window_bounds = array<i64: 16, 32>}, {pipeline_mode = #tpu.pipeline_mode<synchronous>, transform_indices = @transform_4, window_bounds = array<i64: 16, 1>}, {pipeline_mode = #tpu.pipeline_mode<synchronous>, transform_indices = @transform_5, window_bounds = array<i64: 16, 16>}, {pipeline_mode = #tpu.pipeline_mode<synchronous>, transform_indices = @transform_6, window_bounds = array<i64: 16, 1>}, {pipeline_mode = #tpu.pipeline_mode<synchronous>, transform_indices = @transform_7, window_bounds = array<i64: 32, 16>}, {pipeline_mode = #tpu.pipeline_mode<synchronous>, transform_indices = @transform_8, window_bounds = array<i64: 32, 1>}, {pipeline_mode = #tpu.pipeline_mode<synchronous>, transform_indices = @transform_9, window_bounds = array<i64: 32, 32>}, {pipeline_mode = #tpu.pipeline_mode<synchronous>, transform_indices = @transform_10, window_bounds = array<i64: 32, 32>}, {pipeline_mode = #tpu.pipeline_mode<synchronous>, transform_indices = @transform_11, window_bounds = array<i64: 32, 1>}, {transform_indices = @transform_12, window_bounds = array<i64: 1, 32, 256>}]} {
    %c0 = arith.constant 0 : index
    %c0_0 = arith.constant 0 : index
    %c0_1 = arith.constant 0 : index
    %0 = vector.load %arg2[%c0, %c0_0, %c0_1] : memref<1x32x256xbf16, #tpu.memory_space<vmem>>, vector<1x32x256xbf16>
    %1 = vector.shape_cast %0 : vector<1x32x256xbf16> to vector<32x256xbf16>
    %c0_2 = arith.constant 0 : index
    %c0_3 = arith.constant 0 : index
    %2 = vector.load %arg5[%c0_2, %c0_3] : memref<16x32xbf16, #tpu.memory_space<vmem>>, vector<16x32xbf16>
    %cst = arith.constant dense<0.000000e+00> : vector<16x256xf32>
    %3 = tpu.matmul %2, %1, %cst {dimension_numbers = #tpu.dot_dimension_numbers<[1], [0], [0], [1], [0, 0, 1, 1], [], []>} : vector<16x32xbf16>, vector<32x256xbf16>, vector<16x256xf32> -> vector<16x256xf32>
    %c0_4 = arith.constant 0 : index
    %c0_5 = arith.constant 0 : index
    %4 = vector.load %arg6[%c0_4, %c0_5] : memref<16x1xf32, #tpu.memory_space<vmem>>, vector<16x1xf32>
    %5 = vector.broadcast %4 : vector<16x1xf32> to vector<16x256xf32>
    %6 = arith.addf %3, %5 : vector<16x256xf32>
    %cst_6 = arith.constant 0.000000e+00 : f32
    %7 = vector.broadcast %cst_6 : f32 to vector<16x256xf32>
    %8 = arith.maximumf %6, %7 : vector<16x256xf32>
    %9 = arith.truncf %8 : vector<16x256xf32> to vector<16x256xbf16>
    %c0_7 = arith.constant 0 : index
    %c0_8 = arith.constant 0 : index
    %10 = vector.load %arg7[%c0_7, %c0_8] : memref<16x16xbf16, #tpu.memory_space<vmem>>, vector<16x16xbf16>
    %cst_9 = arith.constant dense<0.000000e+00> : vector<16x256xf32>
    %11 = tpu.matmul %10, %9, %cst_9 {dimension_numbers = #tpu.dot_dimension_numbers<[1], [0], [0], [1], [0, 0, 1, 1], [], []>} : vector<16x16xbf16>, vector<16x256xbf16>, vector<16x256xf32> -> vector<16x256xf32>
    %c0_10 = arith.constant 0 : index
    %c0_11 = arith.constant 0 : index
    %12 = vector.load %arg8[%c0_10, %c0_11] : memref<16x1xf32, #tpu.memory_space<vmem>>, vector<16x1xf32>
    %13 = vector.broadcast %12 : vector<16x1xf32> to vector<16x256xf32>
    %14 = arith.addf %11, %13 : vector<16x256xf32>
    %cst_12 = arith.constant 0.000000e+00 : f32
    %15 = vector.broadcast %cst_12 : f32 to vector<16x256xf32>
    %16 = arith.maximumf %14, %15 : vector<16x256xf32>
    %17 = arith.truncf %16 : vector<16x256xf32> to vector<16x256xbf16>
    %c0_13 = arith.constant 0 : index
    %c0_14 = arith.constant 0 : index
    %c0_15 = arith.constant 0 : index
    %18 = vector.load %arg3[%c0_13, %c0_14, %c0_15] : memref<1x8x16xbf16, #tpu.memory_space<vmem>>, vector<1x8x16xbf16>
    %19 = vector.shape_cast %18 : vector<1x8x16xbf16> to vector<8x16xbf16>
    %c0_16 = arith.constant 0 : index
    %c0_17 = arith.constant 0 : index
    %c0_18 = arith.constant 0 : index
    %20 = vector.load %arg4[%c0_16, %c0_17, %c0_18] : memref<1x16x8xbf16, #tpu.memory_space<vmem>>, vector<1x16x8xbf16>
    %21 = vector.shape_cast %20 : vector<1x16x8xbf16> to vector<16x8xbf16>
    %cst_19 = arith.constant dense<0.000000e+00> : vector<8x256xf32>
    %22 = tpu.matmul %19, %17, %cst_19 {dimension_numbers = #tpu.dot_dimension_numbers<[1], [0], [0], [1], [0, 0, 1, 1], [], []>} : vector<8x16xbf16>, vector<16x256xbf16>, vector<8x256xf32> -> vector<8x256xf32>
    %cst_20 = arith.constant dense<0xFF800000> : vector<256xf32>
    %23 = vector.multi_reduction <maximumf>, %22, %cst_20 [0] : vector<8x256xf32> to vector<256xf32>
    %24 = vector.shape_cast %23 : vector<256xf32> to vector<1x256xf32>
    %25 = vector.broadcast %24 : vector<1x256xf32> to vector<8x256xf32>
    %26 = arith.subf %22, %25 : vector<8x256xf32>
    %27 = math.exp %26 : vector<8x256xf32>
    %cst_21 = arith.constant dense<0.000000e+00> : vector<256xf32>
    %28 = vector.multi_reduction <add>, %27, %cst_21 [0] : vector<8x256xf32> to vector<256xf32>
    %29 = vector.shape_cast %28 : vector<256xf32> to vector<1x256xf32>
    %30 = tpu.reciprocal %29 {approx = true} : vector<1x256xf32> -> vector<1x256xf32>
    %31 = vector.broadcast %30 : vector<1x256xf32> to vector<8x256xf32>
    %32 = arith.mulf %27, %31 : vector<8x256xf32>
    %33 = arith.truncf %32 : vector<8x256xf32> to vector<8x256xbf16>
    %cst_22 = arith.constant dense<0.000000e+00> : vector<16x256xf32>
    %34 = tpu.matmul %21, %33, %cst_22 {dimension_numbers = #tpu.dot_dimension_numbers<[1], [0], [0], [1], [0, 0, 1, 1], [], []>} : vector<16x8xbf16>, vector<8x256xbf16>, vector<16x256xf32> -> vector<16x256xf32>
    %35 = arith.truncf %34 : vector<16x256xf32> to vector<16x256xbf16>
    %c0_23 = arith.constant 0 : index
    %c0_24 = arith.constant 0 : index
    %36 = vector.load %arg9[%c0_23, %c0_24] : memref<32x16xbf16, #tpu.memory_space<vmem>>, vector<32x16xbf16>
    %cst_25 = arith.constant dense<0.000000e+00> : vector<32x256xf32>
    %37 = tpu.matmul %36, %35, %cst_25 {dimension_numbers = #tpu.dot_dimension_numbers<[1], [0], [0], [1], [0, 0, 1, 1], [], []>} : vector<32x16xbf16>, vector<16x256xbf16>, vector<32x256xf32> -> vector<32x256xf32>
    %c0_26 = arith.constant 0 : index
    %c0_27 = arith.constant 0 : index
    %38 = vector.load %arg10[%c0_26, %c0_27] : memref<32x1xf32, #tpu.memory_space<vmem>>, vector<32x1xf32>
    %39 = vector.broadcast %38 : vector<32x1xf32> to vector<32x256xf32>
    %40 = arith.addf %37, %39 : vector<32x256xf32>
    %cst_28 = arith.constant 0.000000e+00 : f32
    %41 = vector.broadcast %cst_28 : f32 to vector<32x256xf32>
    %42 = arith.maximumf %40, %41 : vector<32x256xf32>
    %43 = arith.truncf %42 : vector<32x256xf32> to vector<32x256xbf16>
    %c0_29 = arith.constant 0 : index
    %c0_30 = arith.constant 0 : index
    %44 = vector.load %arg11[%c0_29, %c0_30] : memref<32x32xbf16, #tpu.memory_space<vmem>>, vector<32x32xbf16>
    %cst_31 = arith.constant dense<0.000000e+00> : vector<32x256xf32>
    %45 = tpu.matmul %44, %43, %cst_31 {dimension_numbers = #tpu.dot_dimension_numbers<[1], [0], [0], [1], [0, 0, 1, 1], [], []>} : vector<32x32xbf16>, vector<32x256xbf16>, vector<32x256xf32> -> vector<32x256xf32>
    %c0_32 = arith.constant 0 : index
    %c0_33 = arith.constant 0 : index
    %46 = vector.load %arg12[%c0_32, %c0_33] : memref<32x32xbf16, #tpu.memory_space<vmem>>, vector<32x32xbf16>
    %cst_34 = arith.constant dense<0.000000e+00> : vector<32x256xf32>
    %47 = tpu.matmul %46, %1, %cst_34 {dimension_numbers = #tpu.dot_dimension_numbers<[1], [0], [0], [1], [0, 0, 1, 1], [], []>} : vector<32x32xbf16>, vector<32x256xbf16>, vector<32x256xf32> -> vector<32x256xf32>
    %48 = arith.addf %45, %47 : vector<32x256xf32>
    %c0_35 = arith.constant 0 : index
    %c0_36 = arith.constant 0 : index
    %49 = vector.load %arg13[%c0_35, %c0_36] : memref<32x1xf32, #tpu.memory_space<vmem>>, vector<32x1xf32>
    %50 = vector.broadcast %49 : vector<32x1xf32> to vector<32x256xf32>
    %51 = arith.addf %48, %50 : vector<32x256xf32>
    %cst_37 = arith.constant 0.000000e+00 : f32
    %52 = vector.broadcast %cst_37 : f32 to vector<32x256xf32>
    %53 = arith.maximumf %51, %52 : vector<32x256xf32>
    %c0_38 = arith.constant 0 : index
    %c0_39 = arith.constant 0 : index
    %c0_40 = arith.constant 0 : index
    %54 = vector.load %arg14[%c0_38, %c0_39, %c0_40] : memref<1x32x256xf32, #tpu.memory_space<vmem>>, vector<1x32x256xf32>
    %55 = vector.shape_cast %54 : vector<1x32x256xf32> to vector<32x256xf32>
    %56 = vector.shape_cast %53 : vector<32x256xf32> to vector<1x32x256xf32>
    tpu.vector_store %arg14[%c0_38, %c0_39, %c0_40], %56 {strides = array<i32>} : memref<1x32x256xf32, #tpu.memory_space<vmem>>, vector<1x32x256xf32>,
    return
  }
  func.func @transform_0(%arg0: i32, %arg1: i32) -> (i32, i32, i32) {
    %c0_i32 = arith.constant 0 : i32
    %c0_i32_0 = arith.constant 0 : i32
    return %arg0, %c0_i32, %arg1 : i32, i32, i32
  }
  func.func @transform_1(%arg0: i32, %arg1: i32) -> (i32, i32, i32) {
    %c0_i32 = arith.constant 0 : i32
    %c0_i32_0 = arith.constant 0 : i32
    %c0_i32_1 = arith.constant 0 : i32
    return %arg0, %c0_i32, %c0_i32_0 : i32, i32, i32
  }
  func.func @transform_2(%arg0: i32, %arg1: i32) -> (i32, i32, i32) {
    %c0_i32 = arith.constant 0 : i32
    %c0_i32_0 = arith.constant 0 : i32
    %c0_i32_1 = arith.constant 0 : i32
    return %arg0, %c0_i32, %c0_i32_0 : i32, i32, i32
  }
  func.func @transform_3(%arg0: i32, %arg1: i32) -> (i32, i32) {
    %c0_i32 = arith.constant 0 : i32
    %c0_i32_0 = arith.constant 0 : i32
    %c0_i32_1 = arith.constant 0 : i32
    return %c0_i32, %c0_i32_0 : i32, i32
  }
  func.func @transform_4(%arg0: i32, %arg1: i32) -> (i32, i32) {
    %c0_i32 = arith.constant 0 : i32
    %c0_i32_0 = arith.constant 0 : i32
    %c0_i32_1 = arith.constant 0 : i32
    return %c0_i32, %c0_i32_0 : i32, i32
  }
  func.func @transform_5(%arg0: i32, %arg1: i32) -> (i32, i32) {
    %c0_i32 = arith.constant 0 : i32
    %c0_i32_0 = arith.constant 0 : i32
    %c0_i32_1 = arith.constant 0 : i32
    return %c0_i32, %c0_i32_0 : i32, i32
  }
  func.func @transform_6(%arg0: i32, %arg1: i32) -> (i32, i32) {
    %c0_i32 = arith.constant 0 : i32
    %c0_i32_0 = arith.constant 0 : i32
    %c0_i32_1 = arith.constant 0 : i32
    return %c0_i32, %c0_i32_0 : i32, i32
  }
  func.func @transform_7(%arg0: i32, %arg1: i32) -> (i32, i32) {
    %c0_i32 = arith.constant 0 : i32
    %c0_i32_0 = arith.constant 0 : i32
    %c0_i32_1 = arith.constant 0 : i32
    return %c0_i32, %c0_i32_0 : i32, i32
  }
  func.func @transform_8(%arg0: i32, %arg1: i32) -> (i32, i32) {
    %c0_i32 = arith.constant 0 : i32
    %c0_i32_0 = arith.constant 0 : i32
    %c0_i32_1 = arith.constant 0 : i32
    return %c0_i32, %c0_i32_0 : i32, i32
  }
  func.func @transform_9(%arg0: i32, %arg1: i32) -> (i32, i32) {
    %c0_i32 = arith.constant 0 : i32
    %c0_i32_0 = arith.constant 0 : i32
    %c0_i32_1 = arith.constant 0 : i32
    return %c0_i32, %c0_i32_0 : i32, i32
  }
  func.func @transform_10(%arg0: i32, %arg1: i32) -> (i32, i32) {
    %c0_i32 = arith.constant 0 : i32
    %c0_i32_0 = arith.constant 0 : i32
    %c0_i32_1 = arith.constant 0 : i32
    return %c0_i32, %c0_i32_0 : i32, i32
  }
  func.func @transform_11(%arg0: i32, %arg1: i32) -> (i32, i32) {
    %c0_i32 = arith.constant 0 : i32
    %c0_i32_0 = arith.constant 0 : i32
    %c0_i32_1 = arith.constant 0 : i32
    return %c0_i32, %c0_i32_0 : i32, i32
  }
  func.func @transform_12(%arg0: i32, %arg1: i32) -> (i32, i32, i32) {
    %c0_i32 = arith.constant 0 : i32
    %c0_i32_0 = arith.constant 0 : i32
    return %arg0, %c0_i32, %arg1 : i32, i32, i32
  }
}

</mosaic_0001>

<llo_original>
// kernel: tpu_custom_call.1
$region0: #{tpu_custom_call.1}
  #allocation0 [shape = 'u32[]', space=smem, size = 0x4, offset = 0x4, fixed_abs, tag = 'smem constant byte address 0x4 - core index']
  #allocation1 [shape = 'u32[144,128]{1,0:T(1,128)}', space=vmem, size = 0x12000, scoped, tag = 'internal scratch']
  %s0 = inlined_call_operand.vmem [shape: bf16[2,32,256], index: 0, kind: input, shape index: {}]
  %s1 = inlined_call_operand.vmem [shape: bf16[2,8,16], index: 1, kind: input, shape index: {}]
  %s2 = inlined_call_operand.vmem [shape: bf16[2,16,8], index: 2, kind: input, shape index: {}]
  %s3 = inlined_call_operand.vmem [shape: bf16[16,32], index: 3, kind: input, shape index: {}]
  %s4 = inlined_call_operand.vmem [shape: f32[16,1], index: 4, kind: input, shape index: {}]
  %s5 = inlined_call_operand.vmem [shape: bf16[16,16], index: 5, kind: input, shape index: {}]
  %s6 = inlined_call_operand.vmem [shape: f32[16,1], index: 6, kind: input, shape index: {}]
  %s7 = inlined_call_operand.vmem [shape: bf16[32,16], index: 7, kind: input, shape index: {}]
  %s8 = inlined_call_operand.vmem [shape: f32[32,1], index: 8, kind: input, shape index: {}]
  %s9 = inlined_call_operand.vmem [shape: bf16[32,32], index: 9, kind: input, shape index: {}]
  %s10 = inlined_call_operand.vmem [shape: bf16[32,32], index: 10, kind: input, shape index: {}]
  %s11 = inlined_call_operand.vmem [shape: f32[32,1], index: 11, kind: input, shape index: {}]
  %s12 = inlined_call_operand.hbm [shape: f32[2,32,256], index: 12, kind: output, shape index: {}]
  %s13 = sld [smem:[#allocation0]]
  $region81: #{tpu_custom_call.1} parent=0
    _
  %s15 = ssub.s32 1, %s13
  %s16 = scalar_select 0, %s15, %s13
  $region1: #{tpu_custom_call.1} parent=0
    #allocation2 [shape = 'u8[65536]{0}', space=vmem, size = 0x10000, scoped, tag = 'output window, operand 0']
    #allocation3 [shape = 's32[2]{0}', space=sflag, size = 0x8, scoped, tag = 'scoped memory for tpu_custom_call.1']
    %17 = vsyncpa [#allocation3], 0
    %s18 = scalar_lea.sflag [#allocation3], 1
    %19 = vsyncpa %s18, 0
    loop: start=0, step=1, limit=4
    $region2: #{tpu_custom_call.1} parent=1 // loop_pre_header
      _
    $region3: #{tpu_custom_call.1} parent=1 // loop_header
      %s21 = sphi 0, %s25
      %p22 = scmp.ge.s32.totalorder %s21, 4
      %s28 = sphi 0, %s40
      %s29 = sphi 0, %s36
      %s30 = sphi 0, %s28
      %s31 = sphi 0, %s29
      %s32 = sphi 0, %s30
      %s33 = sphi 0, %s31
      %s45 = sphi 0, %s47
      %s48 = sphi 0, %s45
      %s49 = sphi 0, %s48
      %s65 = sphi 0, %s49
      %s71 = sphi 0, %s73
      %s74 = sphi 0, %s71
      %s75 = sphi 0, %s74
      %s91 = sphi 0, %s75
      %s97 = sphi 0, %s99
      %s100 = sphi 0, %s97
      %s101 = sphi 0, %s100
      %s117 = sphi 0, %s101
      %s121 = sphi 0, %s121
      %s123 = sphi 0, %s121
      %s124 = sphi 0, %s123
      %s138 = sphi 0, %s124
      %s142 = sphi 0, %s142
      %s144 = sphi 0, %s142
      %s145 = sphi 0, %s144
      %s159 = sphi 0, %s145
      %s163 = sphi 0, %s163
      %s165 = sphi 0, %s163
      %s166 = sphi 0, %s165
      %s180 = sphi 0, %s166
      %s184 = sphi 0, %s184
      %s186 = sphi 0, %s184
      %s187 = sphi 0, %s186
      %s201 = sphi 0, %s187
      %s205 = sphi 0, %s205
      %s207 = sphi 0, %s205
      %s208 = sphi 0, %s207
      %s222 = sphi 0, %s208
      %s226 = sphi 0, %s226
      %s228 = sphi 0, %s226
      %s229 = sphi 0, %s228
      %s243 = sphi 0, %s229
      %s247 = sphi 0, %s247
      %s249 = sphi 0, %s247
      %s250 = sphi 0, %s249
      %s264 = sphi 0, %s250
      %s268 = sphi 0, %s268
      %s270 = sphi 0, %s268
      %s271 = sphi 0, %s270
      %s285 = sphi 0, %s271
      %s289 = sphi 0, %s289
      %s291 = sphi 0, %s289
      %s292 = sphi 0, %s291
      %s306 = sphi 0, %s292
      %s314 = sphi 0, %s316
      %s317 = sphi 0, %s314
      %s318 = sphi 0, %s317
      %s334 = sphi 0, %s318
    $region4: #{tpu_custom_call.1} parent=1 // loop_header_branch
      %24 = sbr.rel (%p22) target = $region8
    $region5: #{tpu_custom_call.1} parent=1 // loop_body
      %s26 = ssub.s32 %s21, 1
      %s27 = ssub.s32 %s21, 2
      %s34 = sadd.s32 1, %s29
      %p35 = scmp.ge.s32.totalorder %s34, 1
      %s36 = scalar_select %p35, 0, %s34
      %s37 = sadd.s32 1, %s28
      %s38 = scalar_select %p35, %s37, %s28
      %p39 = scmp.ge.s32.totalorder %s38, 2
      %s40 = scalar_select %p39, 0, %s38
      %s41 = ssub.s32 %s28, %s40
      %s42 = ssub.s32 %s29, %s36
      %s43 = sor.u32 %s41, %s42
      %p44 = scmp.eq.s32.totalorder %s43, 0
      %s46 = sadd.s32 %s45, 1
      %s47 = scalar_select %p44, %s45, %s46
      %p50 = pneg %p44
      %p51 = scmp.eq.s32.totalorder %s21, 1
      %p52 = por %p50, %p51
      %p53 = scmp.ne.s32.totalorder %s45, %s48
      %p54 = scmp.eq.s32.totalorder %s21, 0
      %p55 = por %p53, %p54
      %p56 = scmp.ne.s32.totalorder %s45, %s48
      %p57 = scmp.eq.s32.totalorder %s26, 1
      %p58 = por %p56, %p57
      %p59 = scmp.ne.s32.totalorder %s48, %s49
      %p60 = scmp.eq.s32.totalorder %s26, 0
      %p61 = por %p59, %p60
      %p62 = scmp.ne.s32.totalorder %s48, %s49
      %p63 = scmp.eq.s32.totalorder %s27, 1
      %p64 = por %p62, %p63
      %p66 = scmp.ne.s32.totalorder %s49, %s65
      %p67 = scmp.eq.s32.totalorder %s27, 0
      %p68 = por %p66, %p67
      %s69 = ssub.s32 %s28, %s40
      %p70 = scmp.eq.s32.totalorder %s69, 0
      %s72 = sadd.s32 %s71, 1
      %s73 = scalar_select %p70, %s71, %s72
      %p76 = pneg %p70
      %p77 = scmp.eq.s32.totalorder %s21, 1
      %p78 = por %p76, %p77
      %p79 = scmp.ne.s32.totalorder %s71, %s74
      %p80 = scmp.eq.s32.totalorder %s21, 0
      %p81 = por %p79, %p80
      %p82 = scmp.ne.s32.totalorder %s71, %s74
      %p83 = scmp.eq.s32.totalorder %s26, 1
      %p84 = por %p82, %p83
      %p85 = scmp.ne.s32.totalorder %s74, %s75
      %p86 = scmp.eq.s32.totalorder %s26, 0
      %p87 = por %p85, %p86
      %p88 = scmp.ne.s32.totalorder %s74, %s75
      %p89 = scmp.eq.s32.totalorder %s27, 1
      %p90 = por %p88, %p89
      %p92 = scmp.ne.s32.totalorder %s75, %s91
      %p93 = scmp.eq.s32.totalorder %s27, 0
      %p94 = por %p92, %p93
      %s95 = ssub.s32 %s28, %s40
      %p96 = scmp.eq.s32.totalorder %s95, 0
      %s98 = sadd.s32 %s97, 1
      %s99 = scalar_select %p96, %s97, %s98
      %p102 = pneg %p96
      %p103 = scmp.eq.s32.totalorder %s21, 1
      %p104 = por %p102, %p103
      %p105 = scmp.ne.s32.totalorder %s97, %s100
      %p106 = scmp.eq.s32.totalorder %s21, 0
      %p107 = por %p105, %p106
      %p108 = scmp.ne.s32.totalorder %s97, %s100
      %p109 = scmp.eq.s32.totalorder %s26, 1
      %p110 = por %p108, %p109
      %p111 = scmp.ne.s32.totalorder %s100, %s101
      %p112 = scmp.eq.s32.totalorder %s26, 0
      %p113 = por %p111, %p112
      %p114 = scmp.ne.s32.totalorder %s100, %s101
      %p115 = scmp.eq.s32.totalorder %s27, 1
      %p116 = por %p114, %p115
      %p118 = scmp.ne.s32.totalorder %s101, %s117
      %p119 = scmp.eq.s32.totalorder %s27, 0
      %p120 = por %p118, %p119
      %s122 = sadd.s32 %s121, 1
      %p125 = scmp.eq.s32.totalorder %s21, 1
      %p126 = scmp.ne.s32.totalorder %s121, %s123
      %p127 = scmp.eq.s32.totalorder %s21, 0
      %p128 = por %p126, %p127
      %p129 = scmp.ne.s32.totalorder %s121, %s123
      %p130 = scmp.eq.s32.totalorder %s26, 1
      %p131 = por %p129, %p130
      %p132 = scmp.ne.s32.totalorder %s123, %s124
      %p133 = scmp.eq.s32.totalorder %s26, 0
      %p134 = por %p132, %p133
      %p135 = scmp.ne.s32.totalorder %s123, %s124
      %p136 = scmp.eq.s32.totalorder %s27, 1
      %p137 = por %p135, %p136
      %p139 = scmp.ne.s32.totalorder %s124, %s138
      %p140 = scmp.eq.s32.totalorder %s27, 0
      %p141 = por %p139, %p140
      %s143 = sadd.s32 %s142, 1
      %p146 = scmp.eq.s32.totalorder %s21, 1
      %p147 = scmp.ne.s32.totalorder %s142, %s144
      %p148 = scmp.eq.s32.totalorder %s21, 0
      %p149 = por %p147, %p148
      %p150 = scmp.ne.s32.totalorder %s142, %s144
      %p151 = scmp.eq.s32.totalorder %s26, 1
      %p152 = por %p150, %p151
      %p153 = scmp.ne.s32.totalorder %s144, %s145
      %p154 = scmp.eq.s32.totalorder %s26, 0
      %p155 = por %p153, %p154
      %p156 = scmp.ne.s32.totalorder %s144, %s145
      %p157 = scmp.eq.s32.totalorder %s27, 1
      %p158 = por %p156, %p157
      %p160 = scmp.ne.s32.totalorder %s145, %s159
      %p161 = scmp.eq.s32.totalorder %s27, 0
      %p162 = por %p160, %p161
      %s164 = sadd.s32 %s163, 1
      %p167 = scmp.eq.s32.totalorder %s21, 1
      %p168 = scmp.ne.s32.totalorder %s163, %s165
      %p169 = scmp.eq.s32.totalorder %s21, 0
      %p170 = por %p168, %p169
      %p171 = scmp.ne.s32.totalorder %s163, %s165
      %p172 = scmp.eq.s32.totalorder %s26, 1
      %p173 = por %p171, %p172
      %p174 = scmp.ne.s32.totalorder %s165, %s166
      %p175 = scmp.eq.s32.totalorder %s26, 0
      %p176 = por %p174, %p175
      %p177 = scmp.ne.s32.totalorder %s165, %s166
      %p178 = scmp.eq.s32.totalorder %s27, 1
      %p179 = por %p177, %p178
      %p181 = scmp.ne.s32.totalorder %s166, %s180
      %p182 = scmp.eq.s32.totalorder %s27, 0
      %p183 = por %p181, %p182
      %s185 = sadd.s32 %s184, 1
      %p188 = scmp.eq.s32.totalorder %s21, 1
      %p189 = scmp.ne.s32.totalorder %s184, %s186
      %p190 = scmp.eq.s32.totalorder %s21, 0
      %p191 = por %p189, %p190
      %p192 = scmp.ne.s32.totalorder %s184, %s186
      %p193 = scmp.eq.s32.totalorder %s26, 1
      %p194 = por %p192, %p193
      %p195 = scmp.ne.s32.totalorder %s186, %s187
      %p196 = scmp.eq.s32.totalorder %s26, 0
      %p197 = por %p195, %p196
      %p198 = scmp.ne.s32.totalorder %s186, %s187
      %p199 = scmp.eq.s32.totalorder %s27, 1
      %p200 = por %p198, %p199
      %p202 = scmp.ne.s32.totalorder %s187, %s201
      %p203 = scmp.eq.s32.totalorder %s27, 0
      %p204 = por %p202, %p203
      %s206 = sadd.s32 %s205, 1
      %p209 = scmp.eq.s32.totalorder %s21, 1
      %p210 = scmp.ne.s32.totalorder %s205, %s207
      %p211 = scmp.eq.s32.totalorder %s21, 0
      %p212 = por %p210, %p211
      %p213 = scmp.ne.s32.totalorder %s205, %s207
      %p214 = scmp.eq.s32.totalorder %s26, 1
      %p215 = por %p213, %p214
      %p216 = scmp.ne.s32.totalorder %s207, %s208
      %p217 = scmp.eq.s32.totalorder %s26, 0
      %p218 = por %p216, %p217
      %p219 = scmp.ne.s32.totalorder %s207, %s208
      %p220 = scmp.eq.s32.totalorder %s27, 1
      %p221 = por %p219, %p220
      %p223 = scmp.ne.s32.totalorder %s208, %s222
      %p224 = scmp.eq.s32.totalorder %s27, 0
      %p225 = por %p223, %p224
      %s227 = sadd.s32 %s226, 1
      %p230 = scmp.eq.s32.totalorder %s21, 1
      %p231 = scmp.ne.s32.totalorder %s226, %s228
      %p232 = scmp.eq.s32.totalorder %s21, 0
      %p233 = por %p231, %p232
      %p234 = scmp.ne.s32.totalorder %s226, %s228
      %p235 = scmp.eq.s32.totalorder %s26, 1
      %p236 = por %p234, %p235
      %p237 = scmp.ne.s32.totalorder %s228, %s229
      %p238 = scmp.eq.s32.totalorder %s26, 0
      %p239 = por %p237, %p238
      %p240 = scmp.ne.s32.totalorder %s228, %s229
      %p241 = scmp.eq.s32.totalorder %s27, 1
      %p242 = por %p240, %p241
      %p244 = scmp.ne.s32.totalorder %s229, %s243
      %p245 = scmp.eq.s32.totalorder %s27, 0
      %p246 = por %p244, %p245
      %s248 = sadd.s32 %s247, 1
      %p251 = scmp.eq.s32.totalorder %s21, 1
      %p252 = scmp.ne.s32.totalorder %s247, %s249
      %p253 = scmp.eq.s32.totalorder %s21, 0
      %p254 = por %p252, %p253
      %p255 = scmp.ne.s32.totalorder %s247, %s249
      %p256 = scmp.eq.s32.totalorder %s26, 1
      %p257 = por %p255, %p256
      %p258 = scmp.ne.s32.totalorder %s249, %s250
      %p259 = scmp.eq.s32.totalorder %s26, 0
      %p260 = por %p258, %p259
      %p261 = scmp.ne.s32.totalorder %s249, %s250
      %p262 = scmp.eq.s32.totalorder %s27, 1
      %p263 = por %p261, %p262
      %p265 = scmp.ne.s32.totalorder %s250, %s264
      %p266 = scmp.eq.s32.totalorder %s27, 0
      %p267 = por %p265, %p266
      %s269 = sadd.s32 %s268, 1
      %p272 = scmp.eq.s32.totalorder %s21, 1
      %p273 = scmp.ne.s32.totalorder %s268, %s270
      %p274 = scmp.eq.s32.totalorder %s21, 0
      %p275 = por %p273, %p274
      %p276 = scmp.ne.s32.totalorder %s268, %s270
      %p277 = scmp.eq.s32.totalorder %s26, 1
      %p278 = por %p276, %p277
      %p279 = scmp.ne.s32.totalorder %s270, %s271
      %p280 = scmp.eq.s32.totalorder %s26, 0
      %p281 = por %p279, %p280
      %p282 = scmp.ne.s32.totalorder %s270, %s271
      %p283 = scmp.eq.s32.totalorder %s27, 1
      %p284 = por %p282, %p283
      %p286 = scmp.ne.s32.totalorder %s271, %s285
      %p287 = scmp.eq.s32.totalorder %s27, 0
      %p288 = por %p286, %p287
      %s290 = sadd.s32 %s289, 1
      %p293 = scmp.eq.s32.totalorder %s21, 1
      %p294 = scmp.ne.s32.totalorder %s289, %s291
      %p295 = scmp.eq.s32.totalorder %s21, 0
      %p296 = por %p294, %p295
      %p297 = scmp.ne.s32.totalorder %s289, %s291
      %p298 = scmp.eq.s32.totalorder %s26, 1
      %p299 = por %p297, %p298
      %p300 = scmp.ne.s32.totalorder %s291, %s292
      %p301 = scmp.eq.s32.totalorder %s26, 0
      %p302 = por %p300, %p301
      %p303 = scmp.ne.s32.totalorder %s291, %s292
      %p304 = scmp.eq.s32.totalorder %s27, 1
      %p305 = por %p303, %p304
      %p307 = scmp.ne.s32.totalorder %s292, %s306
      %p308 = scmp.eq.s32.totalorder %s27, 0
      %p309 = por %p307, %p308
      %s310 = ssub.s32 %s28, %s40
      %s311 = ssub.s32 %s29, %s36
      %s312 = sor.u32 %s310, %s311
      %p313 = scmp.eq.s32.totalorder %s312, 0
      %s315 = sadd.s32 %s314, 1
      %s316 = scalar_select %p313, %s314, %s315
      %p319 = pneg %p313
      %p320 = scmp.eq.s32.totalorder %s21, 1
      %p321 = por %p319, %p320
      %p322 = scmp.ne.s32.totalorder %s314, %s317
      %p323 = scmp.eq.s32.totalorder %s21, 0
      %p324 = por %p322, %p323
      %p325 = scmp.ne.s32.totalorder %s314, %s317
      %p326 = scmp.eq.s32.totalorder %s26, 1
      %p327 = por %p325, %p326
      %p328 = scmp.ne.s32.totalorder %s317, %s318
      %p329 = scmp.eq.s32.totalorder %s26, 0
      %p330 = por %p328, %p329
      %p331 = scmp.ne.s32.totalorder %s317, %s318
      %p332 = scmp.eq.s32.totalorder %s27, 1
      %p333 = por %p331, %p332
      %p335 = scmp.ne.s32.totalorder %s318, %s334
      %p336 = scmp.eq.s32.totalorder %s27, 0
      %p337 = por %p335, %p336
      %p338 = scmp.le.s32.totalorder 1, %s21
      %p339 = scmp.lt.s32.totalorder %s21, 3
      %p340 = pnand %p338, %p339
      %p341 = pneg %p340
      // Predicated region
      $region9: #{tpu_custom_call.1} parent=5 // pred_check
        _
      $region10: #{tpu_custom_call.1} parent=5 // pred_check_branch
        %343 = sbr.rel (%p340) target = $region12
      $region11: #{tpu_custom_call.1} parent=5 // pred_region
        %s344 = ssub.s32 %s21, 1
        // Predicated region
        $region13: #{tpu_custom_call.1} parent=11 // pred_check
          %p345 = pneg %p134
        $region14: #{tpu_custom_call.1} parent=11 // pred_check_branch
          %347 = sbr.rel (%p345) target = $region16
        $region15: #{tpu_custom_call.1} parent=11 // pred_region
          _
        $region16: #{tpu_custom_call.1} parent=11 // pred_fallthru
          _
        // Predicated region
        $region17: #{tpu_custom_call.1} parent=11 // pred_check
          %p348 = pneg %p155
        $region18: #{tpu_custom_call.1} parent=11 // pred_check_branch
          %350 = sbr.rel (%p348) target = $region20
        $region19: #{tpu_custom_call.1} parent=11 // pred_region
          _
        $region20: #{tpu_custom_call.1} parent=11 // pred_fallthru
          _
        // Predicated region
        $region21: #{tpu_custom_call.1} parent=11 // pred_check
          %p351 = pneg %p176
        $region22: #{tpu_custom_call.1} parent=11 // pred_check_branch
          %353 = sbr.rel (%p351) target = $region24
        $region23: #{tpu_custom_call.1} parent=11 // pred_region
          _
        $region24: #{tpu_custom_call.1} parent=11 // pred_fallthru
          _
        // Predicated region
        $region25: #{tpu_custom_call.1} parent=11 // pred_check
          %p354 = pneg %p197
        $region26: #{tpu_custom_call.1} parent=11 // pred_check_branch
          %356 = sbr.rel (%p354) target = $region28
        $region27: #{tpu_custom_call.1} parent=11 // pred_region
          _
        $region28: #{tpu_custom_call.1} parent=11 // pred_fallthru
          _
        // Predicated region
        $region29: #{tpu_custom_call.1} parent=11 // pred_check
          %p357 = pneg %p218
        $region30: #{tpu_custom_call.1} parent=11 // pred_check_branch
          %359 = sbr.rel (%p357) target = $region32
        $region31: #{tpu_custom_call.1} parent=11 // pred_region
          _
        $region32: #{tpu_custom_call.1} parent=11 // pred_fallthru
          _
        // Predicated region
        $region33: #{tpu_custom_call.1} parent=11 // pred_check
          %p360 = pneg %p239
        $region34: #{tpu_custom_call.1} parent=11 // pred_check_branch
          %362 = sbr.rel (%p360) target = $region36
        $region35: #{tpu_custom_call.1} parent=11 // pred_region
          _
        $region36: #{tpu_custom_call.1} parent=11 // pred_fallthru
          _
        // Predicated region
        $region37: #{tpu_custom_call.1} parent=11 // pred_check
          %p363 = pneg %p260
        $region38: #{tpu_custom_call.1} parent=11 // pred_check_branch
          %365 = sbr.rel (%p363) target = $region40
        $region39: #{tpu_custom_call.1} parent=11 // pred_region
          _
        $region40: #{tpu_custom_call.1} parent=11 // pred_fallthru
          _
        // Predicated region
        $region41: #{tpu_custom_call.1} parent=11 // pred_check
          %p366 = pneg %p281
        $region42: #{tpu_custom_call.1} parent=11 // pred_check_branch
          %368 = sbr.rel (%p366) target = $region44
        $region43: #{tpu_custom_call.1} parent=11 // pred_region
          _
        $region44: #{tpu_custom_call.1} parent=11 // pred_fallthru
          _
        // Predicated region
        $region45: #{tpu_custom_call.1} parent=11 // pred_check
          %p369 = pneg %p302
        $region46: #{tpu_custom_call.1} parent=11 // pred_check_branch
          %371 = sbr.rel (%p369) target = $region48
        $region47: #{tpu_custom_call.1} parent=11 // pred_region
          _
        $region48: #{tpu_custom_call.1} parent=11 // pred_fallthru
          _
      $region12: #{tpu_custom_call.1} parent=5 // pred_fallthru
        _
      %p372 = scmp.lt.s32.totalorder %s21, 2
      // Predicated region
      $region49: #{tpu_custom_call.1} parent=5 // pred_check
        %p373 = pneg %p372
      $region50: #{tpu_custom_call.1} parent=5 // pred_check_branch
        %375 = sbr.rel (%p373) target = $region52
      $region51: #{tpu_custom_call.1} parent=5 // pred_region
        // Predicated region
        $region53: #{tpu_custom_call.1} parent=51 // pred_check
          %p376 = pneg %p55
        $region54: #{tpu_custom_call.1} parent=51 // pred_check_branch
          %378 = sbr.rel (%p376) target = $region56
        $region55: #{tpu_custom_call.1} parent=51 // pred_region
          %s379 = smul.u32 2, %s29
          %p380 = scmp.lt.s32.totalorder %s28, 1
          %s381 = scalar_select %p380, %s28, 1
          %p382 = scmp.lt.s32.totalorder %s379, 1
          %s383 = scalar_select %p382, %s379, 1
          %s384 = smul.addr %s381, 8
          %s385 = sadd.s32 %s383, %s384
          %s386 = smul.addr %s385, 4
          %s387 = scalar_lea.vmem %s0, %s386
          %s388 = smul.u32 2, %s29
        $region56: #{tpu_custom_call.1} parent=51 // pred_fallthru
          _
        // Predicated region
        $region57: #{tpu_custom_call.1} parent=51 // pred_check
          %p389 = pneg %p81
        $region58: #{tpu_custom_call.1} parent=51 // pred_check_branch
          %391 = sbr.rel (%p389) target = $region60
        $region59: #{tpu_custom_call.1} parent=51 // pred_region
          %p392 = scmp.lt.s32.totalorder %s28, 1
          %s393 = scalar_select %p392, %s28, 1
          %s394 = smul.addr %s393, 4
          %s395 = scalar_lea.vmem %s1, %s394
        $region60: #{tpu_custom_call.1} parent=51 // pred_fallthru
          _
        // Predicated region
        $region61: #{tpu_custom_call.1} parent=51 // pred_check
          %p396 = pneg %p107
        $region62: #{tpu_custom_call.1} parent=51 // pred_check_branch
          %398 = sbr.rel (%p396) target = $region64
        $region63: #{tpu_custom_call.1} parent=51 // pred_region
          %p399 = scmp.lt.s32.totalorder %s28, 1
          %s400 = scalar_select %p399, %s28, 1
          %s401 = smul.addr %s400, 2
          %s402 = smul.addr %s401, 4
          %s403 = scalar_lea.vmem %s2, %s402
        $region64: #{tpu_custom_call.1} parent=51 // pred_fallthru
          _
      $region52: #{tpu_custom_call.1} parent=5 // pred_fallthru
        _
      %p404 = scmp.le.s32.totalorder 1, %s21
      %p405 = scmp.lt.s32.totalorder %s21, 3
      %p406 = pnand %p404, %p405
      %p407 = pneg %p406
      // Predicated region
      $region65: #{tpu_custom_call.1} parent=5 // pred_check
        _
      $region66: #{tpu_custom_call.1} parent=5 // pred_check_branch
        %409 = sbr.rel (%p406) target = $region68
      $region67: #{tpu_custom_call.1} parent=5 // pred_region
        %s410 = ssub.s32 %s21, 1
        %s411 = smul.u32 2, %s31
        %p412 = scmp.lt.s32.totalorder %s30, 1
        %s413 = scalar_select %p412, %s30, 1
        %p414 = scmp.lt.s32.totalorder %s411, 1
        %s415 = scalar_select %p414, %s411, 1
        %s416 = smul.addr %s413, 8
        %s417 = sadd.s32 %s415, %s416
        %s418 = smul.addr %s417, 4
        %s419 = scalar_lea.vmem %s0, %s418
        %p420 = pneg %p61
        %p421 = pneg %p58
        %p422 = scmp.lt.s32.totalorder %s30, 1
        %s423 = scalar_select %p422, %s30, 1
        %s424 = smul.addr %s423, 4
        %s425 = scalar_lea.vmem %s1, %s424
        %p426 = pneg %p87
        %p427 = pneg %p84
        %p428 = scmp.lt.s32.totalorder %s30, 1
        %s429 = scalar_select %p428, %s30, 1
        %s430 = smul.addr %s429, 2
        %s431 = smul.addr %s430, 4
        %s432 = scalar_lea.vmem %s2, %s431
        %p433 = pneg %p113
        %p434 = pneg %p110
        %p435 = pneg %p134
        %p436 = pneg %p131
        %p437 = pneg %p155
        %p438 = pneg %p152
        %p439 = pneg %p176
        %p440 = pneg %p173
        %p441 = pneg %p197
        %p442 = pneg %p194
        %p443 = pneg %p218
        %p444 = pneg %p215
        %p445 = pneg %p239
        %p446 = pneg %p236
        %p447 = pneg %p260
        %p448 = pneg %p257
        %p449 = pneg %p281
        %p450 = pneg %p278
        %p451 = pneg %p302
        %p452 = pneg %p299
        %p453 = pneg %p330
        %p454 = pneg %p327
        %s455 = sand.u32 %s317, 1
        %s456 = scalar_lea.sflag [#allocation3], %s455
        %s457 = sand.u32 %s317, 1
        %s458 = smul.addr %s457, 64
        %s459 = scalar_lea.vmem [#allocation2], %s458
        %s460 = smul.u32 2, %s31
        %p461 = scmp.lt.s32.totalorder %s30, 1
        %s462 = scalar_select %p461, %s30, 1
        %p463 = scmp.lt.s32.totalorder %s460, 1
        %s464 = scalar_select %p463, %s460, 1
        %s465 = smul.addr %s462, 8
        %s466 = sadd.s32 %s464, %s465
        %s467 = smul.addr %s466, 4
        %s468 = scalar_lea.vmem %s0, %s467
        %s469 = smul.u32 2, %s31
        %p470 = scmp.lt.s32.totalorder %s30, 1
        %s471 = scalar_select %p470, %s30, 1
        %s472 = smul.addr %s471, 4
        %s473 = scalar_lea.vmem %s1, %s472
        %p474 = scmp.lt.s32.totalorder %s30, 1
        %s475 = scalar_select %p474, %s30, 1
        %s476 = smul.addr %s475, 2
        %s477 = smul.addr %s476, 4
        %s478 = scalar_lea.vmem %s2, %s477
        %s479 = smul.u32 2, %s31
        %v481 = vld [vmem:[%s468] sm:$0xff]
        %v482 = vld [vmem:[%s468 + $0x8] sm:$0xff]
        %v483 = vld [vmem:[%s468 + $0x10] sm:$0xff]
        %v484 = vld [vmem:[%s468 + $0x18] sm:$0xff]
        %v485 = vld [vmem:[%s3] sm:$0xf]
        %v486 = vld [vmem:[%s3 + $0x4] sm:$0xf]
        %v487 = vld [vmem:[%s4] sm:$0xff]
        %v488 = vld [vmem:[%s4 + $0x8] sm:$0xff]
        %490 = vset.pattern.permute.xlu0 0
        %491 = vperm.xlu0 %490, %v487
        %v492 = vpop.permute.xlu0 %491
        %495 = vset.pattern.permute.xlu0 0
        %496 = vperm.xlu0 %495, %v488
        %v497 = vpop.permute.xlu0 %496
        %v501 = vunpack.c.l.b16 %v485
        %v502 = vunpack.c.l.b16 %v486
        %v503 = vpack.c.b16 %v502, %v501
        %v508 = vunpack.c.l.b16 %v481
        %v509 = vunpack.c.h.b16 %v481
        %v510 = vunpack.c.l.b16 %v482
        %v511 = vunpack.c.h.b16 %v482
        %v512 = vunpack.c.l.b16 %v483
        %v513 = vunpack.c.h.b16 %v483
        %v514 = vunpack.c.l.b16 %v484
        %v515 = vunpack.c.h.b16 %v484
        %v516 = vpack.c.b16 %v510, %v508
        %v517 = vpack.c.b16 %v511, %v509
        %v518 = vpack.c.b16 %v514, %v512
        %v519 = vpack.c.b16 %v515, %v513
        %vm524 = vcmask 261120
        %v526 = vsel %vm524, %v503, 0
        %528 = vmatprep.subr.bf16.mxu0 0
        %529 = vmatpush1.bf16.msra.mxu0 0
        %530 = vmatprep.subr.bf16.mxu0 0
        %531 = vmatpush1.bf16.msra.mxu0 0
        %532 = vmatprep.subr.bf16.mxu0 0
        %533 = vmatpush1.bf16.msra.mxu0 0
        %534 = vmatprep.subr.bf16.mxu0 0
        %535 = vmatpush1.bf16.msra.mxu0 0
        %536 = vmatprep.subr.bf16.mxu0 0
        %537 = vmatpush1.bf16.msra.mxu0 0
        %538 = vmatprep.subr.bf16.mxu0 0
        %539 = vmatpush1.bf16.msra.mxu0 0
        %540 = vmatprep.subr.bf16.mxu0 %v519
        %541 = vmatpush1.bf16.msra.mxu0 %v518
        %542 = vmatprep.subr.bf16.mxu0 %v517
        %543 = vmatpush1.bf16.msra.mxu0 %v516
        %544 = vmatprep.subr.bf16.mxu0 0
        %545 = vmatpush2.bf16.msra.mxu0 0
        %546 = vmatprep.subr.bf16.mxu0 0
        %547 = vmatpush2.bf16.msra.mxu0 0
        %548 = vmatprep.subr.bf16.mxu0 0
        %549 = vmatpush2.bf16.msra.mxu0 0
        %550 = vmatprep.subr.bf16.mxu0 0
        %551 = vmatpush2.bf16.msra.mxu0 0
        %552 = vmatprep.subr.bf16.mxu0 0
        %553 = vmatpush2.bf16.msra.mxu0 0
        %554 = vmatprep.subr.bf16.mxu0 0
        %555 = vmatpush2.bf16.msra.mxu0 0
        %556 = vmatprep.subr.bf16.mxu0 0
        %557 = vmatpush2.bf16.msra.mxu0 0
        %558 = vmatprep.subr.bf16.mxu0 0
        %559 = vmatpush2.bf16.msra.mxu0 0
        %560 = vmatprep.mubr.bf16.mxu0 0
        %561 = vmatmul.mubr.bf16.gmra.mxu0 %v526
        %v562 = vpop.f32.mrf.mxu0
        %v563 = vadd.f32 %v492, %v562
        %v564 = vpop.f32.mrf.mxu0
        %v565 = vadd.f32 %v492, %v564
        %v566 = vpop.f32.mrf.mxu0
        %v567 = vadd.f32 %v497, %v566
        %v568 = vpop.f32.mrf.mxu0
        %v569 = vadd.f32 %v497, %v568
        %570 = vdwg.mxu0
        %v571 = vmax.f32 %v563, 0.0
        %v572 = vmax.f32 %v565, 0.0
        %v573 = vmax.f32 %v567, 0.0
        %v574 = vmax.f32 %v569, 0.0
        %v575 = vpack.c.bf16 %v573, %v571
        %v576 = vpack.c.bf16 %v574, %v572
        %v577 = vld [vmem:[%s5] sm:$0xf]
        %v578 = vld [vmem:[%s5 + $0x4] sm:$0xf]
        %v579 = vld [vmem:[%s6] sm:$0xff]
        %v580 = vld [vmem:[%s6 + $0x8] sm:$0xff]
        %582 = vset.pattern.permute.xlu0 0
        %583 = vperm.xlu0 %582, %v579
        %v584 = vpop.permute.xlu0 %583
        %587 = vset.pattern.permute.xlu0 0
        %588 = vperm.xlu0 %587, %v580
        %v589 = vpop.permute.xlu0 %588
        %v593 = vunpack.c.l.b16 %v577
        %v594 = vunpack.c.l.b16 %v578
        %v595 = vpack.c.b16 %v594, %v593
        %vm596 = vcmask 130048
        %v598 = vsel %vm596, %v595, 0
        %600 = vmatprep.subr.bf16.mxu0 0
        %601 = vmatpush1.bf16.msra.mxu0 0
        %602 = vmatprep.subr.bf16.mxu0 0
        %603 = vmatpush1.bf16.msra.mxu0 0
        %604 = vmatprep.subr.bf16.mxu0 0
        %605 = vmatpush1.bf16.msra.mxu0 0
        %606 = vmatprep.subr.bf16.mxu0 0
        %607 = vmatpush1.bf16.msra.mxu0 0
        %608 = vmatprep.subr.bf16.mxu0 0
        %609 = vmatpush1.bf16.msra.mxu0 0
        %610 = vmatprep.subr.bf16.mxu0 0
        %611 = vmatpush1.bf16.msra.mxu0 0
        %612 = vmatprep.subr.bf16.mxu0 0
        %613 = vmatpush1.bf16.msra.mxu0 0
        %614 = vmatprep.subr.bf16.mxu0 %v576
        %615 = vmatpush1.bf16.msra.mxu0 %v575
        %616 = vmatprep.subr.bf16.mxu0 0
        %617 = vmatpush2.bf16.msra.mxu0 0
        %618 = vmatprep.subr.bf16.mxu0 0
        %619 = vmatpush2.bf16.msra.mxu0 0
        %620 = vmatprep.subr.bf16.mxu0 0
        %621 = vmatpush2.bf16.msra.mxu0 0
        %622 = vmatprep.subr.bf16.mxu0 0
        %623 = vmatpush2.bf16.msra.mxu0 0
        %624 = vmatprep.subr.bf16.mxu0 0
        %625 = vmatpush2.bf16.msra.mxu0 0
        %626 = vmatprep.subr.bf16.mxu0 0
        %627 = vmatpush2.bf16.msra.mxu0 0
        %628 = vmatprep.subr.bf16.mxu0 0
        %629 = vmatpush2.bf16.msra.mxu0 0
        %630 = vmatprep.subr.bf16.mxu0 0
        %631 = vmatpush2.bf16.msra.mxu0 0
        %632 = vmatprep.mubr.bf16.mxu0 0
        %633 = vmatmul.mubr.bf16.gmra.mxu0 %v598
        %v634 = vpop.f32.mrf.mxu0
        %v635 = vadd.f32 %v584, %v634
        %v636 = vpop.f32.mrf.mxu0
        %v637 = vadd.f32 %v584, %v636
        %v638 = vpop.f32.mrf.mxu0
        %v639 = vadd.f32 %v589, %v638
        %v640 = vpop.f32.mrf.mxu0
        %v641 = vadd.f32 %v589, %v640
        %642 = vdwg.mxu0
        %v643 = vmax.f32 %v635, 0.0
        %v644 = vmax.f32 %v637, 0.0
        %v645 = vmax.f32 %v639, 0.0
        %v646 = vmax.f32 %v641, 0.0
        %v647 = vpack.c.bf16 %v645, %v643
        %v648 = vpack.c.bf16 %v646, %v644
        %v649 = vld [vmem:[%s473] sm:$0xf]
        %v650 = vld [vmem:[%s478] sm:$0xf]
        %v651 = vld [vmem:[%s478 + $0x4] sm:$0xf]
        %v653 = vsel %vm596, %v649, 0
        %655 = vmatprep.subr.bf16.mxu0 0
        %656 = vmatpush1.bf16.msra.mxu0 0
        %657 = vmatprep.subr.bf16.mxu0 0
        %658 = vmatpush1.bf16.msra.mxu0 0
        %659 = vmatprep.subr.bf16.mxu0 0
        %660 = vmatpush1.bf16.msra.mxu0 0
        %661 = vmatprep.subr.bf16.mxu0 0
        %662 = vmatpush1.bf16.msra.mxu0 0
        %663 = vmatprep.subr.bf16.mxu0 0
        %664 = vmatpush1.bf16.msra.mxu0 0
        %665 = vmatprep.subr.bf16.mxu0 0
        %666 = vmatpush1.bf16.msra.mxu0 0
        %667 = vmatprep.subr.bf16.mxu0 0
        %668 = vmatpush1.bf16.msra.mxu0 0
        %669 = vmatprep.subr.bf16.mxu0 %v648
        %670 = vmatpush1.bf16.msra.mxu0 %v647
        %671 = vmatprep.subr.bf16.mxu0 0
        %672 = vmatpush2.bf16.msra.mxu0 0
        %673 = vmatprep.subr.bf16.mxu0 0
        %674 = vmatpush2.bf16.msra.mxu0 0
        %675 = vmatprep.subr.bf16.mxu0 0
        %676 = vmatpush2.bf16.msra.mxu0 0
        %677 = vmatprep.subr.bf16.mxu0 0
        %678 = vmatpush2.bf16.msra.mxu0 0
        %679 = vmatprep.subr.bf16.mxu0 0
        %680 = vmatpush2.bf16.msra.mxu0 0
        %681 = vmatprep.subr.bf16.mxu0 0
        %682 = vmatpush2.bf16.msra.mxu0 0
        %683 = vmatprep.subr.bf16.mxu0 0
        %684 = vmatpush2.bf16.msra.mxu0 0
        %685 = vmatprep.subr.bf16.mxu0 0
        %686 = vmatpush2.bf16.msra.mxu0 0
        %687 = vmatprep.mubr.bf16.mxu0 0
        %688 = vmatmul.mubr.bf16.gmra.mxu0 %v653
        %v689 = vpop.f32.mrf.mxu0
        %v690 = vadd.f32 0.0, %v689
        %v691 = vpop.f32.mrf.mxu0
        %v692 = vadd.f32 0.0, %v691
        %v693 = vpop.f32.mrf.mxu0
        %v694 = vpop.f32.mrf.mxu0
        %695 = vdwg.mxu0
        %v696 = vrot.slane %v690, 4
        %v697 = vmax.f32 %v690, %v696
        %v698 = vrot.slane %v697, 2
        %v699 = vmax.f32 %v697, %v698
        %v700 = vrot.slane %v699, 1
        %v701 = vmax.f32 %v699, %v700
        %v702 = vrot.slane %v692, 4
        %v703 = vmax.f32 %v692, %v702
        %v704 = vrot.slane %v703, 2
        %v705 = vmax.f32 %v703, %v704
        %v706 = vrot.slane %v705, 1
        %v707 = vmax.f32 %v705, %v706
        %v708 = vsub.f32 %v690, %v701
        %v709 = vsub.f32 %v692, %v707
        %v710 = vmul.f32 %v708, 1.442695
        %v711 = vpow.pop %v710
        %v712 = vmul.f32 %v709, 1.442695
        %v713 = vpow.pop %v712
        %v714 = vrot.slane %v711, 4
        %v715 = vadd.f32 %v711, %v714
        %v716 = vrot.slane %v715, 2
        %v717 = vadd.f32 %v715, %v716
        %v718 = vrot.slane %v717, 1
        %v719 = vadd.f32 %v717, %v718
        %v720 = vrot.slane %v713, 4
        %v721 = vadd.f32 %v713, %v720
        %v722 = vrot.slane %v721, 2
        %v723 = vadd.f32 %v721, %v722
        %v724 = vrot.slane %v723, 1
        %v725 = vadd.f32 %v723, %v724
        %v726 = vrcp.pop %v719
        %v727 = vrcp.pop %v725
        %v728 = vmul.f32 %v711, %v726
        %v729 = vmul.f32 %v713, %v727
        %v730 = vpack.c.bf16 %v728, %v728
        %v731 = vpack.c.bf16 %v729, %v729
        %v734 = vunpack.c.l.b16 %v650
        %v735 = vunpack.c.l.b16 %v651
        %v736 = vpack.c.b16 %v735, %v734
        %vm737 = vcmask 64512
        %v739 = vsel %vm737, %v736, 0
        %vm741 = vcmask 1043456
        %v743 = vsel %vm741, %v730, 0
        %v746 = vsel %vm741, %v731, 0
        %748 = vmatprep.subr.bf16.mxu0 0
        %749 = vmatpush1.bf16.msra.mxu0 0
        %750 = vmatprep.subr.bf16.mxu0 0
        %751 = vmatpush1.bf16.msra.mxu0 0
        %752 = vmatprep.subr.bf16.mxu0 0
        %753 = vmatpush1.bf16.msra.mxu0 0
        %754 = vmatprep.subr.bf16.mxu0 0
        %755 = vmatpush1.bf16.msra.mxu0 0
        %756 = vmatprep.subr.bf16.mxu0 0
        %757 = vmatpush1.bf16.msra.mxu0 0
        %758 = vmatprep.subr.bf16.mxu0 0
        %759 = vmatpush1.bf16.msra.mxu0 0
        %760 = vmatprep.subr.bf16.mxu0 0
        %761 = vmatpush1.bf16.msra.mxu0 0
        %762 = vmatprep.subr.bf16.mxu0 %v746
        %763 = vmatpush1.bf16.msra.mxu0 %v743
        %764 = vmatprep.subr.bf16.mxu0 0
        %765 = vmatpush2.bf16.msra.mxu0 0
        %766 = vmatprep.subr.bf16.mxu0 0
        %767 = vmatpush2.bf16.msra.mxu0 0
        %768 = vmatprep.subr.bf16.mxu0 0
        %769 = vmatpush2.bf16.msra.mxu0 0
        %770 = vmatprep.subr.bf16.mxu0 0
        %771 = vmatpush2.bf16.msra.mxu0 0
        %772 = vmatprep.subr.bf16.mxu0 0
        %773 = vmatpush2.bf16.msra.mxu0 0
        %774 = vmatprep.subr.bf16.mxu0 0
        %775 = vmatpush2.bf16.msra.mxu0 0
        %776 = vmatprep.subr.bf16.mxu0 0
        %777 = vmatpush2.bf16.msra.mxu0 0
        %778 = vmatprep.subr.bf16.mxu0 0
        %779 = vmatpush2.bf16.msra.mxu0 0
        %780 = vmatprep.mubr.bf16.mxu0 0
        %781 = vmatmul.mubr.bf16.gmra.mxu0 %v739
        %v782 = vpop.f32.mrf.mxu0
        %v783 = vadd.f32 0.0, %v782
        %v784 = vpop.f32.mrf.mxu0
        %v785 = vadd.f32 0.0, %v784
        %v786 = vpop.f32.mrf.mxu0
        %v787 = vadd.f32 0.0, %v786
        %v788 = vpop.f32.mrf.mxu0
        %v789 = vadd.f32 0.0, %v788
        %790 = vdwg.mxu0
        %v791 = vpack.c.bf16 %v787, %v783
        %v792 = vpack.c.bf16 %v789, %v785
        %v793 = vld [vmem:[%s7] sm:$0xf]
        %v794 = vld [vmem:[%s7 + $0x4] sm:$0xf]
        %v795 = vld [vmem:[%s7 + $0x8] sm:$0xf]
        %v796 = vld [vmem:[%s7 + $0xc] sm:$0xf]
        %v797 = vld [vmem:[%s8] sm:$0xff]
        %v798 = vld [vmem:[%s8 + $0x8] sm:$0xff]
        %v799 = vld [vmem:[%s8 + $0x10] sm:$0xff]
        %v800 = vld [vmem:[%s8 + $0x18] sm:$0xff]
        %802 = vset.pattern.permute.xlu0 0
        %803 = vperm.xlu0 %802, %v797
        %v804 = vpop.permute.xlu0 %803
        %807 = vset.pattern.permute.xlu0 0
        %808 = vperm.xlu0 %807, %v798
        %v809 = vpop.permute.xlu0 %808
        %812 = vset.pattern.permute.xlu0 0
        %813 = vperm.xlu0 %812, %v799
        %v814 = vpop.permute.xlu0 %813
        %817 = vset.pattern.permute.xlu0 0
        %818 = vperm.xlu0 %817, %v800
        %v819 = vpop.permute.xlu0 %818
        %v825 = vunpack.c.l.b16 %v793
        %v826 = vunpack.c.l.b16 %v794
        %v827 = vunpack.c.l.b16 %v795
        %v828 = vunpack.c.l.b16 %v796
        %v829 = vpack.c.b16 %v826, %v825
        %v830 = vpack.c.b16 %v828, %v827
        %v832 = vsel %vm596, %v829, 0
        %v835 = vsel %vm596, %v830, 0
        %837 = vmatprep.subr.bf16.mxu0 0
        %838 = vmatpush1.bf16.msra.mxu0 0
        %839 = vmatprep.subr.bf16.mxu0 0
        %840 = vmatpush1.bf16.msra.mxu0 0
        %841 = vmatprep.subr.bf16.mxu0 0
        %842 = vmatpush1.bf16.msra.mxu0 0
        %843 = vmatprep.subr.bf16.mxu0 0
        %844 = vmatpush1.bf16.msra.mxu0 0
        %845 = vmatprep.subr.bf16.mxu0 0
        %846 = vmatpush1.bf16.msra.mxu0 0
        %847 = vmatprep.subr.bf16.mxu0 0
        %848 = vmatpush1.bf16.msra.mxu0 0
        %849 = vmatprep.subr.bf16.mxu0 0
        %850 = vmatpush1.bf16.msra.mxu0 0
        %851 = vmatprep.subr.bf16.mxu0 %v792
        %852 = vmatpush1.bf16.msra.mxu0 %v791
        %853 = vmatprep.subr.bf16.mxu0 0
        %854 = vmatpush2.bf16.msra.mxu0 0
        %855 = vmatprep.subr.bf16.mxu0 0
        %856 = vmatpush2.bf16.msra.mxu0 0
        %857 = vmatprep.subr.bf16.mxu0 0
        %858 = vmatpush2.bf16.msra.mxu0 0
        %859 = vmatprep.subr.bf16.mxu0 0
        %860 = vmatpush2.bf16.msra.mxu0 0
        %861 = vmatprep.subr.bf16.mxu0 0
        %862 = vmatpush2.bf16.msra.mxu0 0
        %863 = vmatprep.subr.bf16.mxu0 0
        %864 = vmatpush2.bf16.msra.mxu0 0
        %865 = vmatprep.subr.bf16.mxu0 0
        %866 = vmatpush2.bf16.msra.mxu0 0
        %867 = vmatprep.subr.bf16.mxu0 0
        %868 = vmatpush2.bf16.msra.mxu0 0
        %869 = vmatprep.mubr.bf16.mxu0 0
        %870 = vmatmul.mubr.bf16.gmra.mxu0 %v832
        %v871 = vpop.f32.mrf.mxu0
        %v872 = vadd.f32 %v804, %v871
        %v873 = vpop.f32.mrf.mxu0
        %v874 = vadd.f32 %v804, %v873
        %v875 = vpop.f32.mrf.mxu0
        %v876 = vadd.f32 %v809, %v875
        %v877 = vpop.f32.mrf.mxu0
        %v878 = vadd.f32 %v809, %v877
        %879 = vmatprep.mubr.bf16.mxu0 0
        %880 = vmatmul.mubr.bf16.gmra.mxu0 %v835
        %v881 = vpop.f32.mrf.mxu0
        %v882 = vadd.f32 %v814, %v881
        %v883 = vpop.f32.mrf.mxu0
        %v884 = vadd.f32 %v814, %v883
        %v885 = vpop.f32.mrf.mxu0
        %v886 = vadd.f32 %v819, %v885
        %v887 = vpop.f32.mrf.mxu0
        %v888 = vadd.f32 %v819, %v887
        %889 = vdwg.mxu0
        %v890 = vmax.f32 %v872, 0.0
        %v891 = vmax.f32 %v874, 0.0
        %v892 = vmax.f32 %v876, 0.0
        %v893 = vmax.f32 %v878, 0.0
        %v894 = vmax.f32 %v882, 0.0
        %v895 = vmax.f32 %v884, 0.0
        %v896 = vmax.f32 %v886, 0.0
        %v897 = vmax.f32 %v888, 0.0
        %v898 = vpack.c.bf16 %v892, %v890
        %v899 = vpack.c.bf16 %v893, %v891
        %v900 = vpack.c.bf16 %v896, %v894
        %v901 = vpack.c.bf16 %v897, %v895
        %v902 = vld [vmem:[%s9] sm:$0xf]
        %v903 = vld [vmem:[%s9 + $0x4] sm:$0xf]
        %v904 = vld [vmem:[%s9 + $0x8] sm:$0xf]
        %v905 = vld [vmem:[%s9 + $0xc] sm:$0xf]
        %v906 = vld [vmem:[%s10] sm:$0xf]
        %v907 = vld [vmem:[%s10 + $0x4] sm:$0xf]
        %v908 = vld [vmem:[%s10 + $0x8] sm:$0xf]
        %v909 = vld [vmem:[%s10 + $0xc] sm:$0xf]
        %v914 = vunpack.c.l.b16 %v906
        %v915 = vunpack.c.l.b16 %v907
        %v916 = vunpack.c.l.b16 %v908
        %v917 = vunpack.c.l.b16 %v909
        %v918 = vpack.c.b16 %v915, %v914
        %v919 = vpack.c.b16 %v917, %v916
        %v921 = vsel %vm524, %v918, 0
        %v924 = vsel %vm524, %v919, 0
        %926 = vmatprep.subr.bf16.mxu0 0
        %927 = vmatpush1.bf16.msra.mxu0 0
        %928 = vmatprep.subr.bf16.mxu0 0
        %929 = vmatpush1.bf16.msra.mxu0 0
        %930 = vmatprep.subr.bf16.mxu0 0
        %931 = vmatpush1.bf16.msra.mxu0 0
        %932 = vmatprep.subr.bf16.mxu0 0
        %933 = vmatpush1.bf16.msra.mxu0 0
        %934 = vmatprep.subr.bf16.mxu0 0
        %935 = vmatpush1.bf16.msra.mxu0 0
        %936 = vmatprep.subr.bf16.mxu0 0
        %937 = vmatpush1.bf16.msra.mxu0 0
        %938 = vmatprep.subr.bf16.mxu0 %v519
        %939 = vmatpush1.bf16.msra.mxu0 %v518
        %940 = vmatprep.subr.bf16.mxu0 %v517
        %941 = vmatpush1.bf16.msra.mxu0 %v516
        %942 = vmatprep.subr.bf16.mxu0 0
        %943 = vmatpush2.bf16.msra.mxu0 0
        %944 = vmatprep.subr.bf16.mxu0 0
        %945 = vmatpush2.bf16.msra.mxu0 0
        %946 = vmatprep.subr.bf16.mxu0 0
        %947 = vmatpush2.bf16.msra.mxu0 0
        %948 = vmatprep.subr.bf16.mxu0 0
        %949 = vmatpush2.bf16.msra.mxu0 0
        %950 = vmatprep.subr.bf16.mxu0 0
        %951 = vmatpush2.bf16.msra.mxu0 0
        %952 = vmatprep.subr.bf16.mxu0 0
        %953 = vmatpush2.bf16.msra.mxu0 0
        %954 = vmatprep.subr.bf16.mxu0 0
        %955 = vmatpush2.bf16.msra.mxu0 0
        %956 = vmatprep.subr.bf16.mxu0 0
        %957 = vmatpush2.bf16.msra.mxu0 0
        %958 = vmatprep.mubr.bf16.mxu0 0
        %959 = vmatmul.mubr.bf16.gmra.mxu0 %v921
        %v960 = vpop.f32.mrf.mxu0
        %v961 = vadd.f32 0.0, %v960
        %v962 = vpop.f32.mrf.mxu0
        %v963 = vadd.f32 0.0, %v962
        %v964 = vpop.f32.mrf.mxu0
        %v965 = vadd.f32 0.0, %v964
        %v966 = vpop.f32.mrf.mxu0
        %v967 = vadd.f32 0.0, %v966
        %968 = vmatprep.mubr.bf16.mxu0 0
        %969 = vmatmul.mubr.bf16.gmra.mxu0 %v924
        %v970 = vpop.f32.mrf.mxu0
        %v971 = vadd.f32 0.0, %v970
        %v972 = vpop.f32.mrf.mxu0
        %v973 = vadd.f32 0.0, %v972
        %v974 = vpop.f32.mrf.mxu0
        %v975 = vadd.f32 0.0, %v974
        %v976 = vpop.f32.mrf.mxu0
        %v977 = vadd.f32 0.0, %v976
        %978 = vdwg.mxu0
        %v983 = vunpack.c.l.b16 %v902
        %v984 = vunpack.c.l.b16 %v903
        %v985 = vunpack.c.l.b16 %v904
        %v986 = vunpack.c.l.b16 %v905
        %v987 = vpack.c.b16 %v984, %v983
        %v988 = vpack.c.b16 %v986, %v985
        %v990 = vsel %vm524, %v987, 0
        %v993 = vsel %vm524, %v988, 0
        %995 = vmatprep.subr.bf16.mxu0 0
        %996 = vmatpush1.bf16.msra.mxu0 0
        %997 = vmatprep.subr.bf16.mxu0 0
        %998 = vmatpush1.bf16.msra.mxu0 0
        %999 = vmatprep.subr.bf16.mxu0 0
        %1000 = vmatpush1.bf16.msra.mxu0 0
        %1001 = vmatprep.subr.bf16.mxu0 0
        %1002 = vmatpush1.bf16.msra.mxu0 0
        %1003 = vmatprep.subr.bf16.mxu0 0
        %1004 = vmatpush1.bf16.msra.mxu0 0
        %1005 = vmatprep.subr.bf16.mxu0 0
        %1006 = vmatpush1.bf16.msra.mxu0 0
        %1007 = vmatprep.subr.bf16.mxu0 %v901
        %1008 = vmatpush1.bf16.msra.mxu0 %v900
        %1009 = vmatprep.subr.bf16.mxu0 %v899
        %1010 = vmatpush1.bf16.msra.mxu0 %v898
        %1011 = vmatprep.subr.bf16.mxu0 0
        %1012 = vmatpush2.bf16.msra.mxu0 0
        %1013 = vmatprep.subr.bf16.mxu0 0
        %1014 = vmatpush2.bf16.msra.mxu0 0
        %1015 = vmatprep.subr.bf16.mxu0 0
        %1016 = vmatpush2.bf16.msra.mxu0 0
        %1017 = vmatprep.subr.bf16.mxu0 0
        %1018 = vmatpush2.bf16.msra.mxu0 0
        %1019 = vmatprep.subr.bf16.mxu0 0
        %1020 = vmatpush2.bf16.msra.mxu0 0
        %1021 = vmatprep.subr.bf16.mxu0 0
        %1022 = vmatpush2.bf16.msra.mxu0 0
        %1023 = vmatprep.subr.bf16.mxu0 0
        %1024 = vmatpush2.bf16.msra.mxu0 0
        %1025 = vmatprep.subr.bf16.mxu0 0
        %1026 = vmatpush2.bf16.msra.mxu0 0
        %1027 = vmatprep.mubr.bf16.mxu0 0
        %1028 = vmatmul.mubr.bf16.gmra.mxu0 %v990
        %v1029 = vpop.f32.mrf.mxu0
        %v1030 = vadd.f32 %v961, %v1029
        %v1031 = vpop.f32.mrf.mxu0
        %v1032 = vadd.f32 %v963, %v1031
        %v1033 = vpop.f32.mrf.mxu0
        %v1034 = vadd.f32 %v965, %v1033
        %v1035 = vpop.f32.mrf.mxu0
        %v1036 = vadd.f32 %v967, %v1035
        %1037 = vmatprep.mubr.bf16.mxu0 0
        %1038 = vmatmul.mubr.bf16.gmra.mxu0 %v993
        %v1039 = vpop.f32.mrf.mxu0
        %v1040 = vadd.f32 %v971, %v1039
        %v1041 = vpop.f32.mrf.mxu0
        %v1042 = vadd.f32 %v973, %v1041
        %v1043 = vpop.f32.mrf.mxu0
        %v1044 = vadd.f32 %v975, %v1043
        %v1045 = vpop.f32.mrf.mxu0
        %v1046 = vadd.f32 %v977, %v1045
        %1047 = vdwg.mxu0
        %v1048 = vld [vmem:[%s11] sm:$0xff]
        %v1049 = vld [vmem:[%s11 + $0x8] sm:$0xff]
        %v1050 = vld [vmem:[%s11 + $0x10] sm:$0xff]
        %v1051 = vld [vmem:[%s11 + $0x18] sm:$0xff]
        %1053 = vset.pattern.permute.xlu0 0
        %1054 = vperm.xlu0 %1053, %v1048
        %v1055 = vpop.permute.xlu0 %1054
        %1058 = vset.pattern.permute.xlu0 0
        %1059 = vperm.xlu0 %1058, %v1049
        %v1060 = vpop.permute.xlu0 %1059
        %1063 = vset.pattern.permute.xlu0 0
        %1064 = vperm.xlu0 %1063, %v1050
        %v1065 = vpop.permute.xlu0 %1064
        %1068 = vset.pattern.permute.xlu0 0
        %1069 = vperm.xlu0 %1068, %v1051
        %v1070 = vpop.permute.xlu0 %1069
        %v1072 = vadd.f32 %v1030, %v1055
        %v1073 = vadd.f32 %v1032, %v1055
        %v1074 = vadd.f32 %v1034, %v1060
        %v1075 = vadd.f32 %v1036, %v1060
        %v1076 = vadd.f32 %v1040, %v1065
        %v1077 = vadd.f32 %v1042, %v1065
        %v1078 = vadd.f32 %v1044, %v1070
        %v1079 = vadd.f32 %v1046, %v1070
        %v1080 = vmax.f32 %v1072, 0.0
        %v1081 = vmax.f32 %v1073, 0.0
        %v1082 = vmax.f32 %v1074, 0.0
        %v1083 = vmax.f32 %v1075, 0.0
        %v1084 = vmax.f32 %v1076, 0.0
        %v1085 = vmax.f32 %v1077, 0.0
        %v1086 = vmax.f32 %v1078, 0.0
        %v1087 = vmax.f32 %v1079, 0.0
        %1088 = vst [vmem:[%s459] sm:$0xff] %v1080
        %1089 = vst [vmem:[%s459 + $0x8] sm:$0xff] %v1081
        %1090 = vst [vmem:[%s459 + $0x10] sm:$0xff] %v1082
        %1091 = vst [vmem:[%s459 + $0x18] sm:$0xff] %v1083
        %1092 = vst [vmem:[%s459 + $0x20] sm:$0xff] %v1084
        %1093 = vst [vmem:[%s459 + $0x28] sm:$0xff] %v1085
        %1094 = vst [vmem:[%s459 + $0x30] sm:$0xff] %v1086
        %1095 = vst [vmem:[%s459 + $0x38] sm:$0xff] %v1087
        %s1096 = sand.u32 %s317, 1
        %s1097 = scalar_lea.sflag [#allocation3], %s1096
        %s1098 = sand.u32 %s317, 1
        %s1099 = smul.addr %s1098, 64
        %s1100 = scalar_lea.vmem [#allocation2], %s1099
        // Predicated region
        $region69: #{tpu_custom_call.1} parent=67 // pred_check
          %p1101 = pneg %p327
        $region70: #{tpu_custom_call.1} parent=67 // pred_check_branch
          %1103 = sbr.rel (%p1101) target = $region72
        $region71: #{tpu_custom_call.1} parent=67 // pred_region
          %s1104 = smul.u32 2, %s31
          %s1106 = ssub.s32 1024, 1024
          %1107 = vsyncadd %s1097, %s1106
          %s1108 = smul.addr %s30, 8
          %s1109 = sadd.s32 %s1104, %s1108
          %s1110 = smul.addr %s1109, 128
          %s1111 = scalar_lea.hbm %s12, %s1110
          %s1112 = sshll.u32 %s1100, 4
          %s1113 = int_to_ptr.vmem [resolvable:$true] %s1112
          %1118 = dma.vmem_to_hbm [thread:$0]  %s1113, 1024, %s1111, %s1097, 256, 256, 16
        $region72: #{tpu_custom_call.1} parent=67 // pred_fallthru
          _
      $region68: #{tpu_custom_call.1} parent=5 // pred_fallthru
        _
      %p1119 = scmp.le.s32.totalorder 2, %s21
      // Predicated region
      $region73: #{tpu_custom_call.1} parent=5 // pred_check
        %p1120 = pneg %p1119
      $region74: #{tpu_custom_call.1} parent=5 // pred_check_branch
        %1122 = sbr.rel (%p1120) target = $region76
      $region75: #{tpu_custom_call.1} parent=5 // pred_region
        %s1123 = ssub.s32 %s21, 2
        // Predicated region
        $region77: #{tpu_custom_call.1} parent=75 // pred_check
          %p1124 = pneg %p333
        $region78: #{tpu_custom_call.1} parent=75 // pred_check_branch
          %1126 = sbr.rel (%p1124) target = $region80
        $region79: #{tpu_custom_call.1} parent=75 // pred_region
          %s1127 = sand.u32 %s318, 1
          %s1128 = scalar_lea.sflag [#allocation3], %s1127
          %s1129 = sand.u32 %s318, 1
          %s1130 = smul.addr %s1129, 64
          %s1131 = scalar_lea.vmem [#allocation2], %s1130
          %1132 = dma.done %s1128, 1024
        $region80: #{tpu_custom_call.1} parent=75 // pred_fallthru
          _
      $region76: #{tpu_custom_call.1} parent=5 // pred_fallthru
        _
    $region6: #{tpu_custom_call.1} parent=1 // loop_footer
      %s25 = sadd.s32 1, %s21
    $region7: #{tpu_custom_call.1} parent=1 // loop_footer_branch
      %20 = sbr.rel target = $region3
    $region8: #{tpu_custom_call.1} parent=1 // loop_exit
      _
    %1133 = vsyncpa [#allocation3], 1
    %s1134 = scalar_lea.sflag [#allocation3], 1
    %1135 = vsyncpa %s1134, 1

// kernel: tpu_custom_call.1
$region0: #{tpu_custom_call.1}
  #allocation0 [shape = 'u32[]', space=smem, size = 0x4, offset = 0x4, fixed_abs, tag = 'smem constant byte address 0x4 - core index']
  #allocation1 [shape = 'u32[144,128]{1,0:T(1,128)}', space=vmem, size = 0x12000, scoped, tag = 'internal scratch']
  %s0 = inlined_call_operand.vmem [shape: bf16[2,32,256], index: 0, kind: input, shape index: {}]
  %s1 = inlined_call_operand.vmem [shape: bf16[2,8,16], index: 1, kind: input, shape index: {}]
  %s2 = inlined_call_operand.vmem [shape: bf16[2,16,8], index: 2, kind: input, shape index: {}]
  %s3 = inlined_call_operand.vmem [shape: bf16[16,32], index: 3, kind: input, shape index: {}]
  %s4 = inlined_call_operand.vmem [shape: f32[16,1], index: 4, kind: input, shape index: {}]
  %s5 = inlined_call_operand.vmem [shape: bf16[16,16], index: 5, kind: input, shape index: {}]
  %s6 = inlined_call_operand.vmem [shape: f32[16,1], index: 6, kind: input, shape index: {}]
  %s7 = inlined_call_operand.vmem [shape: bf16[32,16], index: 7, kind: input, shape index: {}]
  %s8 = inlined_call_operand.vmem [shape: f32[32,1], index: 8, kind: input, shape index: {}]
  %s9 = inlined_call_operand.vmem [shape: bf16[32,32], index: 9, kind: input, shape index: {}]
  %s10 = inlined_call_operand.vmem [shape: bf16[32,32], index: 10, kind: input, shape index: {}]
  %s11 = inlined_call_operand.vmem [shape: f32[32,1], index: 11, kind: input, shape index: {}]
  %s12 = inlined_call_operand.hbm [shape: f32[2,32,256], index: 12, kind: output, shape index: {}]
  %s13 = sld [smem:[#allocation0]]
  $region81: #{tpu_custom_call.1} parent=0
    _
  %s15 = ssub.s32 1, %s13
  %s16 = scalar_select 0, %s15, %s13
  $region1: #{tpu_custom_call.1} parent=0
    #allocation2 [shape = 'u8[65536]{0}', space=vmem, size = 0x10000, scoped, tag = 'output window, operand 0']
    #allocation3 [shape = 's32[2]{0}', space=sflag, size = 0x8, scoped, tag = 'scoped memory for tpu_custom_call.1']
    %17 = vsyncpa [#allocation3], 0
    %s18 = scalar_lea.sflag [#allocation3], 1
    %19 = vsyncpa %s18, 0
    loop: start=0, step=1, limit=4
    $region2: #{tpu_custom_call.1} parent=1 // loop_pre_header
      _
    $region3: #{tpu_custom_call.1} parent=1 // loop_header
      %s21 = sphi 0, %s25
      %p22 = scmp.ge.s32.totalorder %s21, 4
      %s28 = sphi 0, %s40
      %s29 = sphi 0, %s36
      %s30 = sphi 0, %s28
      %s31 = sphi 0, %s29
      %s32 = sphi 0, %s30
      %s33 = sphi 0, %s31
      %s45 = sphi 0, %s47
      %s48 = sphi 0, %s45
      %s49 = sphi 0, %s48
      %s65 = sphi 0, %s49
      %s71 = sphi 0, %s73
      %s74 = sphi 0, %s71
      %s75 = sphi 0, %s74
      %s91 = sphi 0, %s75
      %s97 = sphi 0, %s99
      %s100 = sphi 0, %s97
      %s101 = sphi 0, %s100
      %s117 = sphi 0, %s101
      %s121 = sphi 0, %s121
      %s123 = sphi 0, %s121
      %s124 = sphi 0, %s123
      %s138 = sphi 0, %s124
      %s142 = sphi 0, %s142
      %s144 = sphi 0, %s142
      %s145 = sphi 0, %s144
      %s159 = sphi 0, %s145
      %s163 = sphi 0, %s163
      %s165 = sphi 0, %s163
      %s166 = sphi 0, %s165
      %s180 = sphi 0, %s166
      %s184 = sphi 0, %s184
      %s186 = sphi 0, %s184
      %s187 = sphi 0, %s186
      %s201 = sphi 0, %s187
      %s205 = sphi 0, %s205
      %s207 = sphi 0, %s205
      %s208 = sphi 0, %s207
      %s222 = sphi 0, %s208
      %s226 = sphi 0, %s226
      %s228 = sphi 0, %s226
      %s229 = sphi 0, %s228
      %s243 = sphi 0, %s229
      %s247 = sphi 0, %s247
      %s249 = sphi 0, %s247
      %s250 = sphi 0, %s249
      %s264 = sphi 0, %s250
      %s268 = sphi 0, %s268
      %s270 = sphi 0, %s268
      %s271 = sphi 0, %s270
      %s285 = sphi 0, %s271
      %s289 = sphi 0, %s289
      %s291 = sphi 0, %s289
      %s292 = sphi 0, %s291
      %s306 = sphi 0, %s292
      %s314 = sphi 0, %s316
      %s317 = sphi 0, %s314
      %s318 = sphi 0, %s317
      %s334 = sphi 0, %s318
    $region4: #{tpu_custom_call.1} parent=1 // loop_header_branch
      %24 = sbr.rel (%p22) target = $region8
    $region5: #{tpu_custom_call.1} parent=1 // loop_body
      %s26 = ssub.s32 %s21, 1
      %s27 = ssub.s32 %s21, 2
      %s34 = sadd.s32 1, %s29
      %p35 = scmp.ge.s32.totalorder %s34, 1
      %s36 = scalar_select %p35, 0, %s34
      %s37 = sadd.s32 1, %s28
      %s38 = scalar_select %p35, %s37, %s28
      %p39 = scmp.ge.s32.totalorder %s38, 2
      %s40 = scalar_select %p39, 0, %s38
      %s41 = ssub.s32 %s28, %s40
      %s42 = ssub.s32 %s29, %s36
      %s43 = sor.u32 %s41, %s42
      %p44 = scmp.eq.s32.totalorder %s43, 0
      %s46 = sadd.s32 %s45, 1
      %s47 = scalar_select %p44, %s45, %s46
      %p50 = pneg %p44
      %p51 = scmp.eq.s32.totalorder %s21, 1
      %p52 = por %p50, %p51
      %p53 = scmp.ne.s32.totalorder %s45, %s48
      %p54 = scmp.eq.s32.totalorder %s21, 0
      %p55 = por %p53, %p54
      %p56 = scmp.ne.s32.totalorder %s45, %s48
      %p57 = scmp.eq.s32.totalorder %s26, 1
      %p58 = por %p56, %p57
      %p59 = scmp.ne.s32.totalorder %s48, %s49
      %p60 = scmp.eq.s32.totalorder %s26, 0
      %p61 = por %p59, %p60
      %p62 = scmp.ne.s32.totalorder %s48, %s49
      %p63 = scmp.eq.s32.totalorder %s27, 1
      %p64 = por %p62, %p63
      %p66 = scmp.ne.s32.totalorder %s49, %s65
      %p67 = scmp.eq.s32.totalorder %s27, 0
      %p68 = por %p66, %p67
      %s69 = ssub.s32 %s28, %s40
      %p70 = scmp.eq.s32.totalorder %s69, 0
      %s72 = sadd.s32 %s71, 1
      %s73 = scalar_select %p70, %s71, %s72
      %p76 = pneg %p70
      %p77 = scmp.eq.s32.totalorder %s21, 1
      %p78 = por %p76, %p77
      %p79 = scmp.ne.s32.totalorder %s71, %s74
      %p80 = scmp.eq.s32.totalorder %s21, 0
      %p81 = por %p79, %p80
      %p82 = scmp.ne.s32.totalorder %s71, %s74
      %p83 = scmp.eq.s32.totalorder %s26, 1
      %p84 = por %p82, %p83
      %p85 = scmp.ne.s32.totalorder %s74, %s75
      %p86 = scmp.eq.s32.totalorder %s26, 0
      %p87 = por %p85, %p86
      %p88 = scmp.ne.s32.totalorder %s74, %s75
      %p89 = scmp.eq.s32.totalorder %s27, 1
      %p90 = por %p88, %p89
      %p92 = scmp.ne.s32.totalorder %s75, %s91
      %p93 = scmp.eq.s32.totalorder %s27, 0
      %p94 = por %p92, %p93
      %s95 = ssub.s32 %s28, %s40
      %p96 = scmp.eq.s32.totalorder %s95, 0
      %s98 = sadd.s32 %s97, 1
      %s99 = scalar_select %p96, %s97, %s98
      %p102 = pneg %p96
      %p103 = scmp.eq.s32.totalorder %s21, 1
      %p104 = por %p102, %p103
      %p105 = scmp.ne.s32.totalorder %s97, %s100
      %p106 = scmp.eq.s32.totalorder %s21, 0
      %p107 = por %p105, %p106
      %p108 = scmp.ne.s32.totalorder %s97, %s100
      %p109 = scmp.eq.s32.totalorder %s26, 1
      %p110 = por %p108, %p109
      %p111 = scmp.ne.s32.totalorder %s100, %s101
      %p112 = scmp.eq.s32.totalorder %s26, 0
      %p113 = por %p111, %p112
      %p114 = scmp.ne.s32.totalorder %s100, %s101
      %p115 = scmp.eq.s32.totalorder %s27, 1
      %p116 = por %p114, %p115
      %p118 = scmp.ne.s32.totalorder %s101, %s117
      %p119 = scmp.eq.s32.totalorder %s27, 0
      %p120 = por %p118, %p119
      %s122 = sadd.s32 %s121, 1
      %p125 = scmp.eq.s32.totalorder %s21, 1
      %p126 = scmp.ne.s32.totalorder %s121, %s123
      %p127 = scmp.eq.s32.totalorder %s21, 0
      %p128 = por %p126, %p127
      %p129 = scmp.ne.s32.totalorder %s121, %s123
      %p130 = scmp.eq.s32.totalorder %s26, 1
      %p131 = por %p129, %p130
      %p132 = scmp.ne.s32.totalorder %s123, %s124
      %p133 = scmp.eq.s32.totalorder %s26, 0
      %p134 = por %p132, %p133
      %p135 = scmp.ne.s32.totalorder %s123, %s124
      %p136 = scmp.eq.s32.totalorder %s27, 1
      %p137 = por %p135, %p136
      %p139 = scmp.ne.s32.totalorder %s124, %s138
      %p140 = scmp.eq.s32.totalorder %s27, 0
      %p141 = por %p139, %p140
      %s143 = sadd.s32 %s142, 1
      %p146 = scmp.eq.s32.totalorder %s21, 1
      %p147 = scmp.ne.s32.totalorder %s142, %s144
      %p148 = scmp.eq.s32.totalorder %s21, 0
      %p149 = por %p147, %p148
      %p150 = scmp.ne.s32.totalorder %s142, %s144
      %p151 = scmp.eq.s32.totalorder %s26, 1
      %p152 = por %p150, %p151
      %p153 = scmp.ne.s32.totalorder %s144, %s145
      %p154 = scmp.eq.s32.totalorder %s26, 0
      %p155 = por %p153, %p154
      %p156 = scmp.ne.s32.totalorder %s144, %s145
      %p157 = scmp.eq.s32.totalorder %s27, 1
      %p158 = por %p156, %p157
      %p160 = scmp.ne.s32.totalorder %s145, %s159
      %p161 = scmp.eq.s32.totalorder %s27, 0
      %p162 = por %p160, %p161
      %s164 = sadd.s32 %s163, 1
      %p167 = scmp.eq.s32.totalorder %s21, 1
      %p168 = scmp.ne.s32.totalorder %s163, %s165
      %p169 = scmp.eq.s32.totalorder %s21, 0
      %p170 = por %p168, %p169
      %p171 = scmp.ne.s32.totalorder %s163, %s165
      %p172 = scmp.eq.s32.totalorder %s26, 1
      %p173 = por %p171, %p172
      %p174 = scmp.ne.s32.totalorder %s165, %s166
      %p175 = scmp.eq.s32.totalorder %s26, 0
      %p176 = por %p174, %p175
      %p177 = scmp.ne.s32.totalorder %s165, %s166
      %p178 = scmp.eq.s32.totalorder %s27, 1
      %p179 = por %p177, %p178
      %p181 = scmp.ne.s32.totalorder %s166, %s180
      %p182 = scmp.eq.s32.totalorder %s27, 0
      %p183 = por %p181, %p182
      %s185 = sadd.s32 %s184, 1
      %p188 = scmp.eq.s32.totalorder %s21, 1
      %p189 = scmp.ne.s32.totalorder %s184, %s186
      %p190 = scmp.eq.s32.totalorder %s21, 0
      %p191 = por %p189, %p190
      %p192 = scmp.ne.s32.totalorder %s184, %s186
      %p193 = scmp.eq.s32.totalorder %s26, 1
      %p194 = por %p192, %p193
      %p195 = scmp.ne.s32.totalorder %s186, %s187
      %p196 = scmp.eq.s32.totalorder %s26, 0
      %p197 = por %p195, %p196
      %p198 = scmp.ne.s32.totalorder %s186, %s187
      %p199 = scmp.eq.s32.totalorder %s27, 1
      %p200 = por %p198, %p199
      %p202 = scmp.ne.s32.totalorder %s187, %s201
      %p203 = scmp.eq.s32.totalorder %s27, 0
      %p204 = por %p202, %p203
      %s206 = sadd.s32 %s205, 1
      %p209 = scmp.eq.s32.totalorder %s21, 1
      %p210 = scmp.ne.s32.totalorder %s205, %s207
      %p211 = scmp.eq.s32.totalorder %s21, 0
      %p212 = por %p210, %p211
      %p213 = scmp.ne.s32.totalorder %s205, %s207
      %p214 = scmp.eq.s32.totalorder %s26, 1
      %p215 = por %p213, %p214
      %p216 = scmp.ne.s32.totalorder %s207, %s208
      %p217 = scmp.eq.s32.totalorder %s26, 0
      %p218 = por %p216, %p217
      %p219 = scmp.ne.s32.totalorder %s207, %s208
      %p220 = scmp.eq.s32.totalorder %s27, 1
      %p221 = por %p219, %p220
      %p223 = scmp.ne.s32.totalorder %s208, %s222
      %p224 = scmp.eq.s32.totalorder %s27, 0
      %p225 = por %p223, %p224
      %s227 = sadd.s32 %s226, 1
      %p230 = scmp.eq.s32.totalorder %s21, 1
      %p231 = scmp.ne.s32.totalorder %s226, %s228
      %p232 = scmp.eq.s32.totalorder %s21, 0
      %p233 = por %p231, %p232
      %p234 = scmp.ne.s32.totalorder %s226, %s228
      %p235 = scmp.eq.s32.totalorder %s26, 1
      %p236 = por %p234, %p235
      %p237 = scmp.ne.s32.totalorder %s228, %s229
      %p238 = scmp.eq.s32.totalorder %s26, 0
      %p239 = por %p237, %p238
      %p240 = scmp.ne.s32.totalorder %s228, %s229
      %p241 = scmp.eq.s32.totalorder %s27, 1
      %p242 = por %p240, %p241
      %p244 = scmp.ne.s32.totalorder %s229, %s243
      %p245 = scmp.eq.s32.totalorder %s27, 0
      %p246 = por %p244, %p245
      %s248 = sadd.s32 %s247, 1
      %p251 = scmp.eq.s32.totalorder %s21, 1
      %p252 = scmp.ne.s32.totalorder %s247, %s249
      %p253 = scmp.eq.s32.totalorder %s21, 0
      %p254 = por %p252, %p253
      %p255 = scmp.ne.s32.totalorder %s247, %s249
      %p256 = scmp.eq.s32.totalorder %s26, 1
      %p257 = por %p255, %p256
      %p258 = scmp.ne.s32.totalorder %s249, %s250
      %p259 = scmp.eq.s32.totalorder %s26, 0
      %p260 = por %p258, %p259
      %p261 = scmp.ne.s32.totalorder %s249, %s250
      %p262 = scmp.eq.s32.totalorder %s27, 1
      %p263 = por %p261, %p262
      %p265 = scmp.ne.s32.totalorder %s250, %s264
      %p266 = scmp.eq.s32.totalorder %s27, 0
      %p267 = por %p265, %p266
      %s269 = sadd.s32 %s268, 1
      %p272 = scmp.eq.s32.totalorder %s21, 1
      %p273 = scmp.ne.s32.totalorder %s268, %s270
      %p274 = scmp.eq.s32.totalorder %s21, 0
      %p275 = por %p273, %p274
      %p276 = scmp.ne.s32.totalorder %s268, %s270
      %p277 = scmp.eq.s32.totalorder %s26, 1
      %p278 = por %p276, %p277
      %p279 = scmp.ne.s32.totalorder %s270, %s271
      %p280 = scmp.eq.s32.totalorder %s26, 0
      %p281 = por %p279, %p280
      %p282 = scmp.ne.s32.totalorder %s270, %s271
      %p283 = scmp.eq.s32.totalorder %s27, 1
      %p284 = por %p282, %p283
      %p286 = scmp.ne.s32.totalorder %s271, %s285
      %p287 = scmp.eq.s32.totalorder %s27, 0
      %p288 = por %p286, %p287
      %s290 = sadd.s32 %s289, 1
      %p293 = scmp.eq.s32.totalorder %s21, 1
      %p294 = scmp.ne.s32.totalorder %s289, %s291
      %p295 = scmp.eq.s32.totalorder %s21, 0
      %p296 = por %p294, %p295
      %p297 = scmp.ne.s32.totalorder %s289, %s291
      %p298 = scmp.eq.s32.totalorder %s26, 1
      %p299 = por %p297, %p298
      %p300 = scmp.ne.s32.totalorder %s291, %s292
      %p301 = scmp.eq.s32.totalorder %s26, 0
      %p302 = por %p300, %p301
      %p303 = scmp.ne.s32.totalorder %s291, %s292
      %p304 = scmp.eq.s32.totalorder %s27, 1
      %p305 = por %p303, %p304
      %p307 = scmp.ne.s32.totalorder %s292, %s306
      %p308 = scmp.eq.s32.totalorder %s27, 0
      %p309 = por %p307, %p308
      %s310 = ssub.s32 %s28, %s40
      %s311 = ssub.s32 %s29, %s36
      %s312 = sor.u32 %s310, %s311
      %p313 = scmp.eq.s32.totalorder %s312, 0
      %s315 = sadd.s32 %s314, 1
      %s316 = scalar_select %p313, %s314, %s315
      %p319 = pneg %p313
      %p320 = scmp.eq.s32.totalorder %s21, 1
      %p321 = por %p319, %p320
      %p322 = scmp.ne.s32.totalorder %s314, %s317
      %p323 = scmp.eq.s32.totalorder %s21, 0
      %p324 = por %p322, %p323
      %p325 = scmp.ne.s32.totalorder %s314, %s317
      %p326 = scmp.eq.s32.totalorder %s26, 1
      %p327 = por %p325, %p326
      %p328 = scmp.ne.s32.totalorder %s317, %s318
      %p329 = scmp.eq.s32.totalorder %s26, 0
      %p330 = por %p328, %p329
      %p331 = scmp.ne.s32.totalorder %s317, %s318
      %p332 = scmp.eq.s32.totalorder %s27, 1
      %p333 = por %p331, %p332
      %p335 = scmp.ne.s32.totalorder %s318, %s334
      %p336 = scmp.eq.s32.totalorder %s27, 0
      %p337 = por %p335, %p336
      %p338 = scmp.le.s32.totalorder 1, %s21
      %p339 = scmp.lt.s32.totalorder %s21, 3
      %p340 = pnand %p338, %p339
      %p341 = pneg %p340
      // Predicated region
      $region9: #{tpu_custom_call.1} parent=5 // pred_check
        _
      $region10: #{tpu_custom_call.1} parent=5 // pred_check_branch
        %343 = sbr.rel (%p340) target = $region12
      $region11: #{tpu_custom_call.1} parent=5 // pred_region
        %s344 = ssub.s32 %s21, 1
        // Predicated region
        $region13: #{tpu_custom_call.1} parent=11 // pred_check
          %p345 = pneg %p134
        $region14: #{tpu_custom_call.1} parent=11 // pred_check_branch
          %347 = sbr.rel (%p345) target = $region16
        $region15: #{tpu_custom_call.1} parent=11 // pred_region
          _
        $region16: #{tpu_custom_call.1} parent=11 // pred_fallthru
          _
        // Predicated region
        $region17: #{tpu_custom_call.1} parent=11 // pred_check
          %p348 = pneg %p155
        $region18: #{tpu_custom_call.1} parent=11 // pred_check_branch
          %350 = sbr.rel (%p348) target = $region20
        $region19: #{tpu_custom_call.1} parent=11 // pred_region
          _
        $region20: #{tpu_custom_call.1} parent=11 // pred_fallthru
          _
        // Predicated region
        $region21: #{tpu_custom_call.1} parent=11 // pred_check
          %p351 = pneg %p176
        $region22: #{tpu_custom_call.1} parent=11 // pred_check_branch
          %353 = sbr.rel (%p351) target = $region24
        $region23: #{tpu_custom_call.1} parent=11 // pred_region
          _
        $region24: #{tpu_custom_call.1} parent=11 // pred_fallthru
          _
        // Predicated region
        $region25: #{tpu_custom_call.1} parent=11 // pred_check
          %p354 = pneg %p197
        $region26: #{tpu_custom_call.1} parent=11 // pred_check_branch
          %356 = sbr.rel (%p354) target = $region28
        $region27: #{tpu_custom_call.1} parent=11 // pred_region
          _
        $region28: #{tpu_custom_call.1} parent=11 // pred_fallthru
          _
        // Predicated region
        $region29: #{tpu_custom_call.1} parent=11 // pred_check
          %p357 = pneg %p218
        $region30: #{tpu_custom_call.1} parent=11 // pred_check_branch
          %359 = sbr.rel (%p357) target = $region32
        $region31: #{tpu_custom_call.1} parent=11 // pred_region
          _
        $region32: #{tpu_custom_call.1} parent=11 // pred_fallthru
          _
        // Predicated region
        $region33: #{tpu_custom_call.1} parent=11 // pred_check
          %p360 = pneg %p239
        $region34: #{tpu_custom_call.1} parent=11 // pred_check_branch
          %362 = sbr.rel (%p360) target = $region36
        $region35: #{tpu_custom_call.1} parent=11 // pred_region
          _
        $region36: #{tpu_custom_call.1} parent=11 // pred_fallthru
          _
        // Predicated region
        $region37: #{tpu_custom_call.1} parent=11 // pred_check
          %p363 = pneg %p260
        $region38: #{tpu_custom_call.1} parent=11 // pred_check_branch
          %365 = sbr.rel (%p363) target = $region40
        $region39: #{tpu_custom_call.1} parent=11 // pred_region
          _
        $region40: #{tpu_custom_call.1} parent=11 // pred_fallthru
          _
        // Predicated region
        $region41: #{tpu_custom_call.1} parent=11 // pred_check
          %p366 = pneg %p281
        $region42: #{tpu_custom_call.1} parent=11 // pred_check_branch
          %368 = sbr.rel (%p366) target = $region44
        $region43: #{tpu_custom_call.1} parent=11 // pred_region
          _
        $region44: #{tpu_custom_call.1} parent=11 // pred_fallthru
          _
        // Predicated region
        $region45: #{tpu_custom_call.1} parent=11 // pred_check
          %p369 = pneg %p302
        $region46: #{tpu_custom_call.1} parent=11 // pred_check_branch
          %371 = sbr.rel (%p369) target = $region48
        $region47: #{tpu_custom_call.1} parent=11 // pred_region
          _
        $region48: #{tpu_custom_call.1} parent=11 // pred_fallthru
          _
      $region12: #{tpu_custom_call.1} parent=5 // pred_fallthru
        _
      %p372 = scmp.lt.s32.totalorder %s21, 2
      // Predicated region
      $region49: #{tpu_custom_call.1} parent=5 // pred_check
        %p373 = pneg %p372
      $region50: #{tpu_custom_call.1} parent=5 // pred_check_branch
        %375 = sbr.rel (%p373) target = $region52
      $region51: #{tpu_custom_call.1} parent=5 // pred_region
        // Predicated region
        $region53: #{tpu_custom_call.1} parent=51 // pred_check
          %p376 = pneg %p55
        $region54: #{tpu_custom_call.1} parent=51 // pred_check_branch
          %378 = sbr.rel (%p376) target = $region56
        $region55: #{tpu_custom_call.1} parent=51 // pred_region
          %s379 = smul.u32 2, %s29
          %p380 = scmp.lt.s32.totalorder %s28, 1
          %s381 = scalar_select %p380, %s28, 1
          %p382 = scmp.lt.s32.totalorder %s379, 1
          %s383 = scalar_select %p382, %s379, 1
          %s384 = smul.addr %s381, 8
          %s385 = sadd.s32 %s383, %s384
          %s386 = smul.addr %s385, 4
          %s387 = scalar_lea.vmem %s0, %s386
          %s388 = smul.u32 2, %s29
        $region56: #{tpu_custom_call.1} parent=51 // pred_fallthru
          _
        // Predicated region
        $region57: #{tpu_custom_call.1} parent=51 // pred_check
          %p389 = pneg %p81
        $region58: #{tpu_custom_call.1} parent=51 // pred_check_branch
          %391 = sbr.rel (%p389) target = $region60
        $region59: #{tpu_custom_call.1} parent=51 // pred_region
          %p392 = scmp.lt.s32.totalorder %s28, 1
          %s393 = scalar_select %p392, %s28, 1
          %s394 = smul.addr %s393, 4
          %s395 = scalar_lea.vmem %s1, %s394
        $region60: #{tpu_custom_call.1} parent=51 // pred_fallthru
          _
        // Predicated region
        $region61: #{tpu_custom_call.1} parent=51 // pred_check
          %p396 = pneg %p107
        $region62: #{tpu_custom_call.1} parent=51 // pred_check_branch
          %398 = sbr.rel (%p396) target = $region64
        $region63: #{tpu_custom_call.1} parent=51 // pred_region
          %p399 = scmp.lt.s32.totalorder %s28, 1
          %s400 = scalar_select %p399, %s28, 1
          %s401 = smul.addr %s400, 2
          %s402 = smul.addr %s401, 4
          %s403 = scalar_lea.vmem %s2, %s402
        $region64: #{tpu_custom_call.1} parent=51 // pred_fallthru
          _
      $region52: #{tpu_custom_call.1} parent=5 // pred_fallthru
        _
      %p404 = scmp.le.s32.totalorder 1, %s21
      %p405 = scmp.lt.s32.totalorder %s21, 3
      %p406 = pnand %p404, %p405
      %p407 = pneg %p406
      // Predicated region
      $region65: #{tpu_custom_call.1} parent=5 // pred_check
        _
      $region66: #{tpu_custom_call.1} parent=5 // pred_check_branch
        %409 = sbr.rel (%p406) target = $region68
      $region67: #{tpu_custom_call.1} parent=5 // pred_region
        %s410 = ssub.s32 %s21, 1
        %s411 = smul.u32 2, %s31
        %p412 = scmp.lt.s32.totalorder %s30, 1
        %s413 = scalar_select %p412, %s30, 1
        %p414 = scmp.lt.s32.totalorder %s411, 1
        %s415 = scalar_select %p414, %s411, 1
        %s416 = smul.addr %s413, 8
        %s417 = sadd.s32 %s415, %s416
        %s418 = smul.addr %s417, 4
        %s419 = scalar_lea.vmem %s0, %s418
        %p420 = pneg %p61
        %p421 = pneg %p58
        %p422 = scmp.lt.s32.totalorder %s30, 1
        %s423 = scalar_select %p422, %s30, 1
        %s424 = smul.addr %s423, 4
        %s425 = scalar_lea.vmem %s1, %s424
        %p426 = pneg %p87
        %p427 = pneg %p84
        %p428 = scmp.lt.s32.totalorder %s30, 1
        %s429 = scalar_select %p428, %s30, 1
        %s430 = smul.addr %s429, 2
        %s431 = smul.addr %s430, 4
        %s432 = scalar_lea.vmem %s2, %s431
        %p433 = pneg %p113
        %p434 = pneg %p110
        %p435 = pneg %p134
        %p436 = pneg %p131
        %p437 = pneg %p155
        %p438 = pneg %p152
        %p439 = pneg %p176
        %p440 = pneg %p173
        %p441 = pneg %p197
        %p442 = pneg %p194
        %p443 = pneg %p218
        %p444 = pneg %p215
        %p445 = pneg %p239
        %p446 = pneg %p236
        %p447 = pneg %p260
        %p448 = pneg %p257
        %p449 = pneg %p281
        %p450 = pneg %p278
        %p451 = pneg %p302
        %p452 = pneg %p299
        %p453 = pneg %p330
        %p454 = pneg %p327
        %s455 = sand.u32 %s317, 1
        %s456 = scalar_lea.sflag [#allocation3], %s455
        %s457 = sand.u32 %s317, 1
        %s458 = smul.addr %s457, 64
        %s459 = scalar_lea.vmem [#allocation2], %s458
        %s460 = smul.u32 2, %s31
        %p461 = scmp.lt.s32.totalorder %s30, 1
        %s462 = scalar_select %p461, %s30, 1
        %p463 = scmp.lt.s32.totalorder %s460, 1
        %s464 = scalar_select %p463, %s460, 1
        %s465 = smul.addr %s462, 8
        %s466 = sadd.s32 %s464, %s465
        %s467 = smul.addr %s466, 4
        %s468 = scalar_lea.vmem %s0, %s467
        %s469 = smul.u32 2, %s31
        %p470 = scmp.lt.s32.totalorder %s30, 1
        %s471 = scalar_select %p470, %s30, 1
        %s472 = smul.addr %s471, 4
        %s473 = scalar_lea.vmem %s1, %s472
        %p474 = scmp.lt.s32.totalorder %s30, 1
        %s475 = scalar_select %p474, %s30, 1
        %s476 = smul.addr %s475, 2
        %s477 = smul.addr %s476, 4
        %s478 = scalar_lea.vmem %s2, %s477
        %s479 = smul.u32 2, %s31
        %v481 = vld [vmem:[%s468] sm:$0xff]
        %v482 = vld [vmem:[%s468 + $0x8] sm:$0xff]
        %v483 = vld [vmem:[%s468 + $0x10] sm:$0xff]
        %v484 = vld [vmem:[%s468 + $0x18] sm:$0xff]
        %v485 = vld [vmem:[%s3] sm:$0xf]
        %v486 = vld [vmem:[%s3 + $0x4] sm:$0xf]
        %v487 = vld [vmem:[%s4] sm:$0xff]
        %v488 = vld [vmem:[%s4 + $0x8] sm:$0xff]
        %490 = vset.pattern.permute.xlu0 0
        %491 = vperm.xlu0 %490, %v487
        %v492 = vpop.permute.xlu0 %491
        %495 = vset.pattern.permute.xlu0 0
        %496 = vperm.xlu0 %495, %v488
        %v497 = vpop.permute.xlu0 %496
        %v501 = vunpack.c.l.b16 %v485
        %v502 = vunpack.c.l.b16 %v486
        %v503 = vpack.c.b16 %v502, %v501
        %v508 = vunpack.c.l.b16 %v481
        %v509 = vunpack.c.h.b16 %v481
        %v510 = vunpack.c.l.b16 %v482
        %v511 = vunpack.c.h.b16 %v482
        %v512 = vunpack.c.l.b16 %v483
        %v513 = vunpack.c.h.b16 %v483
        %v514 = vunpack.c.l.b16 %v484
        %v515 = vunpack.c.h.b16 %v484
        %v516 = vpack.c.b16 %v510, %v508
        %v517 = vpack.c.b16 %v511, %v509
        %v518 = vpack.c.b16 %v514, %v512
        %v519 = vpack.c.b16 %v515, %v513
        %vm524 = vcmask 261120
        %v526 = vsel %vm524, %v503, 0
        %528 = vmatprep.subr.bf16.mxu0 0
        %529 = vmatpush1.bf16.msra.mxu0 0
        %530 = vmatprep.subr.bf16.mxu0 0
        %531 = vmatpush1.bf16.msra.mxu0 0
        %532 = vmatprep.subr.bf16.mxu0 0
        %533 = vmatpush1.bf16.msra.mxu0 0
        %534 = vmatprep.subr.bf16.mxu0 0
        %535 = vmatpush1.bf16.msra.mxu0 0
        %536 = vmatprep.subr.bf16.mxu0 0
        %537 = vmatpush1.bf16.msra.mxu0 0
        %538 = vmatprep.subr.bf16.mxu0 0
        %539 = vmatpush1.bf16.msra.mxu0 0
        %540 = vmatprep.subr.bf16.mxu0 %v519
        %541 = vmatpush1.bf16.msra.mxu0 %v518
        %542 = vmatprep.subr.bf16.mxu0 %v517
        %543 = vmatpush1.bf16.msra.mxu0 %v516
        %544 = vmatprep.subr.bf16.mxu0 0
        %545 = vmatpush2.bf16.msra.mxu0 0
        %546 = vmatprep.subr.bf16.mxu0 0
        %547 = vmatpush2.bf16.msra.mxu0 0
        %548 = vmatprep.subr.bf16.mxu0 0
        %549 = vmatpush2.bf16.msra.mxu0 0
        %550 = vmatprep.subr.bf16.mxu0 0
        %551 = vmatpush2.bf16.msra.mxu0 0
        %552 = vmatprep.subr.bf16.mxu0 0
        %553 = vmatpush2.bf16.msra.mxu0 0
        %554 = vmatprep.subr.bf16.mxu0 0
        %555 = vmatpush2.bf16.msra.mxu0 0
        %556 = vmatprep.subr.bf16.mxu0 0
        %557 = vmatpush2.bf16.msra.mxu0 0
        %558 = vmatprep.subr.bf16.mxu0 0
        %559 = vmatpush2.bf16.msra.mxu0 0
        %560 = vmatprep.mubr.bf16.mxu0 0
        %561 = vmatmul.mubr.bf16.gmra.mxu0 %v526
        %v562 = vpop.f32.mrf.mxu0
        %v563 = vadd.f32 %v492, %v562
        %v564 = vpop.f32.mrf.mxu0
        %v565 = vadd.f32 %v492, %v564
        %v566 = vpop.f32.mrf.mxu0
        %v567 = vadd.f32 %v497, %v566
        %v568 = vpop.f32.mrf.mxu0
        %v569 = vadd.f32 %v497, %v568
        %570 = vdwg.mxu0
        %v571 = vmax.f32 %v563, 0.0
        %v572 = vmax.f32 %v565, 0.0
        %v573 = vmax.f32 %v567, 0.0
        %v574 = vmax.f32 %v569, 0.0
        %v575 = vpack.c.bf16 %v573, %v571
        %v576 = vpack.c.bf16 %v574, %v572
        %v577 = vld [vmem:[%s5] sm:$0xf]
        %v578 = vld [vmem:[%s5 + $0x4] sm:$0xf]
        %v579 = vld [vmem:[%s6] sm:$0xff]
        %v580 = vld [vmem:[%s6 + $0x8] sm:$0xff]
        %582 = vset.pattern.permute.xlu0 0
        %583 = vperm.xlu0 %582, %v579
        %v584 = vpop.permute.xlu0 %583
        %587 = vset.pattern.permute.xlu0 0
        %588 = vperm.xlu0 %587, %v580
        %v589 = vpop.permute.xlu0 %588
        %v593 = vunpack.c.l.b16 %v577
        %v594 = vunpack.c.l.b16 %v578
        %v595 = vpack.c.b16 %v594, %v593
        %vm596 = vcmask 130048
        %v598 = vsel %vm596, %v595, 0
        %600 = vmatprep.subr.bf16.mxu0 0
        %601 = vmatpush1.bf16.msra.mxu0 0
        %602 = vmatprep.subr.bf16.mxu0 0
        %603 = vmatpush1.bf16.msra.mxu0 0
        %604 = vmatprep.subr.bf16.mxu0 0
        %605 = vmatpush1.bf16.msra.mxu0 0
        %606 = vmatprep.subr.bf16.mxu0 0
        %607 = vmatpush1.bf16.msra.mxu0 0
        %608 = vmatprep.subr.bf16.mxu0 0
        %609 = vmatpush1.bf16.msra.mxu0 0
        %610 = vmatprep.subr.bf16.mxu0 0
        %611 = vmatpush1.bf16.msra.mxu0 0
        %612 = vmatprep.subr.bf16.mxu0 0
        %613 = vmatpush1.bf16.msra.mxu0 0
        %614 = vmatprep.subr.bf16.mxu0 %v576
        %615 = vmatpush1.bf16.msra.mxu0 %v575
        %616 = vmatprep.subr.bf16.mxu0 0
        %617 = vmatpush2.bf16.msra.mxu0 0
        %618 = vmatprep.subr.bf16.mxu0 0
        %619 = vmatpush2.bf16.msra.mxu0 0
        %620 = vmatprep.subr.bf16.mxu0 0
        %621 = vmatpush2.bf16.msra.mxu0 0
        %622 = vmatprep.subr.bf16.mxu0 0
        %623 = vmatpush2.bf16.msra.mxu0 0
        %624 = vmatprep.subr.bf16.mxu0 0
        %625 = vmatpush2.bf16.msra.mxu0 0
        %626 = vmatprep.subr.bf16.mxu0 0
        %627 = vmatpush2.bf16.msra.mxu0 0
        %628 = vmatprep.subr.bf16.mxu0 0
        %629 = vmatpush2.bf16.msra.mxu0 0
        %630 = vmatprep.subr.bf16.mxu0 0
        %631 = vmatpush2.bf16.msra.mxu0 0
        %632 = vmatprep.mubr.bf16.mxu0 0
        %633 = vmatmul.mubr.bf16.gmra.mxu0 %v598
        %v634 = vpop.f32.mrf.mxu0
        %v635 = vadd.f32 %v584, %v634
        %v636 = vpop.f32.mrf.mxu0
        %v637 = vadd.f32 %v584, %v636
        %v638 = vpop.f32.mrf.mxu0
        %v639 = vadd.f32 %v589, %v638
        %v640 = vpop.f32.mrf.mxu0
        %v641 = vadd.f32 %v589, %v640
        %642 = vdwg.mxu0
        %v643 = vmax.f32 %v635, 0.0
        %v644 = vmax.f32 %v637, 0.0
        %v645 = vmax.f32 %v639, 0.0
        %v646 = vmax.f32 %v641, 0.0
        %v647 = vpack.c.bf16 %v645, %v643
        %v648 = vpack.c.bf16 %v646, %v644
        %v649 = vld [vmem:[%s473] sm:$0xf]
        %v650 = vld [vmem:[%s478] sm:$0xf]
        %v651 = vld [vmem:[%s478 + $0x4] sm:$0xf]
        %v653 = vsel %vm596, %v649, 0
        %655 = vmatprep.subr.bf16.mxu0 0
        %656 = vmatpush1.bf16.msra.mxu0 0
        %657 = vmatprep.subr.bf16.mxu0 0
        %658 = vmatpush1.bf16.msra.mxu0 0
        %659 = vmatprep.subr.bf16.mxu0 0
        %660 = vmatpush1.bf16.msra.mxu0 0
        %661 = vmatprep.subr.bf16.mxu0 0
        %662 = vmatpush1.bf16.msra.mxu0 0
        %663 = vmatprep.subr.bf16.mxu0 0
        %664 = vmatpush1.bf16.msra.mxu0 0
        %665 = vmatprep.subr.bf16.mxu0 0
        %666 = vmatpush1.bf16.msra.mxu0 0
        %667 = vmatprep.subr.bf16.mxu0 0
        %668 = vmatpush1.bf16.msra.mxu0 0
        %669 = vmatprep.subr.bf16.mxu0 %v648
        %670 = vmatpush1.bf16.msra.mxu0 %v647
        %671 = vmatprep.subr.bf16.mxu0 0
        %672 = vmatpush2.bf16.msra.mxu0 0
        %673 = vmatprep.subr.bf16.mxu0 0
        %674 = vmatpush2.bf16.msra.mxu0 0
        %675 = vmatprep.subr.bf16.mxu0 0
        %676 = vmatpush2.bf16.msra.mxu0 0
        %677 = vmatprep.subr.bf16.mxu0 0
        %678 = vmatpush2.bf16.msra.mxu0 0
        %679 = vmatprep.subr.bf16.mxu0 0
        %680 = vmatpush2.bf16.msra.mxu0 0
        %681 = vmatprep.subr.bf16.mxu0 0
        %682 = vmatpush2.bf16.msra.mxu0 0
        %683 = vmatprep.subr.bf16.mxu0 0
        %684 = vmatpush2.bf16.msra.mxu0 0
        %685 = vmatprep.subr.bf16.mxu0 0
        %686 = vmatpush2.bf16.msra.mxu0 0
        %687 = vmatprep.mubr.bf16.mxu0 0
        %688 = vmatmul.mubr.bf16.gmra.mxu0 %v653
        %v689 = vpop.f32.mrf.mxu0
        %v690 = vadd.f32 0.0, %v689
        %v691 = vpop.f32.mrf.mxu0
        %v692 = vadd.f32 0.0, %v691
        %v693 = vpop.f32.mrf.mxu0
        %v694 = vpop.f32.mrf.mxu0
        %695 = vdwg.mxu0
        %v696 = vrot.slane %v690, 4
        %v697 = vmax.f32 %v690, %v696
        %v698 = vrot.slane %v697, 2
        %v699 = vmax.f32 %v697, %v698
        %v700 = vrot.slane %v699, 1
        %v701 = vmax.f32 %v699, %v700
        %v702 = vrot.slane %v692, 4
        %v703 = vmax.f32 %v692, %v702
        %v704 = vrot.slane %v703, 2
        %v705 = vmax.f32 %v703, %v704
        %v706 = vrot.slane %v705, 1
        %v707 = vmax.f32 %v705, %v706
        %v708 = vsub.f32 %v690, %v701
        %v709 = vsub.f32 %v692, %v707
        %v710 = vmul.f32 %v708, 1.442695
        %v711 = vpow.pop %v710
        %v712 = vmul.f32 %v709, 1.442695
        %v713 = vpow.pop %v712
        %v714 = vrot.slane %v711, 4
        %v715 = vadd.f32 %v711, %v714
        %v716 = vrot.slane %v715, 2
        %v717 = vadd.f32 %v715, %v716
        %v718 = vrot.slane %v717, 1
        %v719 = vadd.f32 %v717, %v718
        %v720 = vrot.slane %v713, 4
        %v721 = vadd.f32 %v713, %v720
        %v722 = vrot.slane %v721, 2
        %v723 = vadd.f32 %v721, %v722
        %v724 = vrot.slane %v723, 1
        %v725 = vadd.f32 %v723, %v724
        %v726 = vrcp.pop %v719
        %v727 = vrcp.pop %v725
        %v728 = vmul.f32 %v711, %v726
        %v729 = vmul.f32 %v713, %v727
        %v730 = vpack.c.bf16 %v728, %v728
        %v731 = vpack.c.bf16 %v729, %v729
        %v734 = vunpack.c.l.b16 %v650
        %v735 = vunpack.c.l.b16 %v651
        %v736 = vpack.c.b16 %v735, %v734
        %vm737 = vcmask 64512
        %v739 = vsel %vm737, %v736, 0
        %vm741 = vcmask 1043456
        %v743 = vsel %vm741, %v730, 0
        %v746 = vsel %vm741, %v731, 0
        %748 = vmatprep.subr.bf16.mxu0 0
        %749 = vmatpush1.bf16.msra.mxu0 0
        %750 = vmatprep.subr.bf16.mxu0 0
        %751 = vmatpush1.bf16.msra.mxu0 0
        %752 = vmatprep.subr.bf16.mxu0 0
        %753 = vmatpush1.bf16.msra.mxu0 0
        %754 = vmatprep.subr.bf16.mxu0 0
        %755 = vmatpush1.bf16.msra.mxu0 0
        %756 = vmatprep.subr.bf16.mxu0 0
        %757 = vmatpush1.bf16.msra.mxu0 0
        %758 = vmatprep.subr.bf16.mxu0 0
        %759 = vmatpush1.bf16.msra.mxu0 0
        %760 = vmatprep.subr.bf16.mxu0 0
        %761 = vmatpush1.bf16.msra.mxu0 0
        %762 = vmatprep.subr.bf16.mxu0 %v746
        %763 = vmatpush1.bf16.msra.mxu0 %v743
        %764 = vmatprep.subr.bf16.mxu0 0
        %765 = vmatpush2.bf16.msra.mxu0 0
        %766 = vmatprep.subr.bf16.mxu0 0
        %767 = vmatpush2.bf16.msra.mxu0 0
        %768 = vmatprep.subr.bf16.mxu0 0
        %769 = vmatpush2.bf16.msra.mxu0 0
        %770 = vmatprep.subr.bf16.mxu0 0
        %771 = vmatpush2.bf16.msra.mxu0 0
        %772 = vmatprep.subr.bf16.mxu0 0
        %773 = vmatpush2.bf16.msra.mxu0 0
        %774 = vmatprep.subr.bf16.mxu0 0
        %775 = vmatpush2.bf16.msra.mxu0 0
        %776 = vmatprep.subr.bf16.mxu0 0
        %777 = vmatpush2.bf16.msra.mxu0 0
        %778 = vmatprep.subr.bf16.mxu0 0
        %779 = vmatpush2.bf16.msra.mxu0 0
        %780 = vmatprep.mubr.bf16.mxu0 0
        %781 = vmatmul.mubr.bf16.gmra.mxu0 %v739
        %v782 = vpop.f32.mrf.mxu0
        %v783 = vadd.f32 0.0, %v782
        %v784 = vpop.f32.mrf.mxu0
        %v785 = vadd.f32 0.0, %v784
        %v786 = vpop.f32.mrf.mxu0
        %v787 = vadd.f32 0.0, %v786
        %v788 = vpop.f32.mrf.mxu0
        %v789 = vadd.f32 0.0, %v788
        %790 = vdwg.mxu0
        %v791 = vpack.c.bf16 %v787, %v783
        %v792 = vpack.c.bf16 %v789, %v785
        %v793 = vld [vmem:[%s7] sm:$0xf]
        %v794 = vld [vmem:[%s7 + $0x4] sm:$0xf]
        %v795 = vld [vmem:[%s7 + $0x8] sm:$0xf]
        %v796 = vld [vmem:[%s7 + $0xc] sm:$0xf]
        %v797 = vld [vmem:[%s8] sm:$0xff]
        %v798 = vld [vmem:[%s8 + $0x8] sm:$0xff]
        %v799 = vld [vmem:[%s8 + $0x10] sm:$0xff]
        %v800 = vld [vmem:[%s8 + $0x18] sm:$0xff]
        %802 = vset.pattern.permute.xlu0 0
        %803 = vperm.xlu0 %802, %v797
        %v804 = vpop.permute.xlu0 %803
        %807 = vset.pattern.permute.xlu0 0
        %808 = vperm.xlu0 %807, %v798
        %v809 = vpop.permute.xlu0 %808
        %812 = vset.pattern.permute.xlu0 0
        %813 = vperm.xlu0 %812, %v799
        %v814 = vpop.permute.xlu0 %813
        %817 = vset.pattern.permute.xlu0 0
        %818 = vperm.xlu0 %817, %v800
        %v819 = vpop.permute.xlu0 %818
        %v825 = vunpack.c.l.b16 %v793
        %v826 = vunpack.c.l.b16 %v794
        %v827 = vunpack.c.l.b16 %v795
        %v828 = vunpack.c.l.b16 %v796
        %v829 = vpack.c.b16 %v826, %v825
        %v830 = vpack.c.b16 %v828, %v827
        %v832 = vsel %vm596, %v829, 0
        %v835 = vsel %vm596, %v830, 0
        %837 = vmatprep.subr.bf16.mxu0 0
        %838 = vmatpush1.bf16.msra.mxu0 0
        %839 = vmatprep.subr.bf16.mxu0 0
        %840 = vmatpush1.bf16.msra.mxu0 0
        %841 = vmatprep.subr.bf16.mxu0 0
        %842 = vmatpush1.bf16.msra.mxu0 0
        %843 = vmatprep.subr.bf16.mxu0 0
        %844 = vmatpush1.bf16.msra.mxu0 0
        %845 = vmatprep.subr.bf16.mxu0 0
        %846 = vmatpush1.bf16.msra.mxu0 0
        %847 = vmatprep.subr.bf16.mxu0 0
        %848 = vmatpush1.bf16.msra.mxu0 0
        %849 = vmatprep.subr.bf16.mxu0 0
        %850 = vmatpush1.bf16.msra.mxu0 0
        %851 = vmatprep.subr.bf16.mxu0 %v792
        %852 = vmatpush1.bf16.msra.mxu0 %v791
        %853 = vmatprep.subr.bf16.mxu0 0
        %854 = vmatpush2.bf16.msra.mxu0 0
        %855 = vmatprep.subr.bf16.mxu0 0
        %856 = vmatpush2.bf16.msra.mxu0 0
        %857 = vmatprep.subr.bf16.mxu0 0
        %858 = vmatpush2.bf16.msra.mxu0 0
        %859 = vmatprep.subr.bf16.mxu0 0
        %860 = vmatpush2.bf16.msra.mxu0 0
        %861 = vmatprep.subr.bf16.mxu0 0
        %862 = vmatpush2.bf16.msra.mxu0 0
        %863 = vmatprep.subr.bf16.mxu0 0
        %864 = vmatpush2.bf16.msra.mxu0 0
        %865 = vmatprep.subr.bf16.mxu0 0
        %866 = vmatpush2.bf16.msra.mxu0 0
        %867 = vmatprep.subr.bf16.mxu0 0
        %868 = vmatpush2.bf16.msra.mxu0 0
        %869 = vmatprep.mubr.bf16.mxu0 0
        %870 = vmatmul.mubr.bf16.gmra.mxu0 %v832
        %v871 = vpop.f32.mrf.mxu0
        %v872 = vadd.f32 %v804, %v871
        %v873 = vpop.f32.mrf.mxu0
        %v874 = vadd.f32 %v804, %v873
        %v875 = vpop.f32.mrf.mxu0
        %v876 = vadd.f32 %v809, %v875
        %v877 = vpop.f32.mrf.mxu0
        %v878 = vadd.f32 %v809, %v877
        %879 = vmatprep.mubr.bf16.mxu0 0
        %880 = vmatmul.mubr.bf16.gmra.mxu0 %v835
        %v881 = vpop.f32.mrf.mxu0
        %v882 = vadd.f32 %v814, %v881
        %v883 = vpop.f32.mrf.mxu0
        %v884 = vadd.f32 %v814, %v883
        %v885 = vpop.f32.mrf.mxu0
        %v886 = vadd.f32 %v819, %v885
        %v887 = vpop.f32.mrf.mxu0
        %v888 = vadd.f32 %v819, %v887
        %889 = vdwg.mxu0
        %v890 = vmax.f32 %v872, 0.0
        %v891 = vmax.f32 %v874, 0.0
        %v892 = vmax.f32 %v876, 0.0
        %v893 = vmax.f32 %v878, 0.0
        %v894 = vmax.f32 %v882, 0.0
        %v895 = vmax.f32 %v884, 0.0
        %v896 = vmax.f32 %v886, 0.0
        %v897 = vmax.f32 %v888, 0.0
        %v898 = vpack.c.bf16 %v892, %v890
        %v899 = vpack.c.bf16 %v893, %v891
        %v900 = vpack.c.bf16 %v896, %v894
        %v901 = vpack.c.bf16 %v897, %v895
        %v902 = vld [vmem:[%s9] sm:$0xf]
        %v903 = vld [vmem:[%s9 + $0x4] sm:$0xf]
        %v904 = vld [vmem:[%s9 + $0x8] sm:$0xf]
        %v905 = vld [vmem:[%s9 + $0xc] sm:$0xf]
        %v906 = vld [vmem:[%s10] sm:$0xf]
        %v907 = vld [vmem:[%s10 + $0x4] sm:$0xf]
        %v908 = vld [vmem:[%s10 + $0x8] sm:$0xf]
        %v909 = vld [vmem:[%s10 + $0xc] sm:$0xf]
        %v914 = vunpack.c.l.b16 %v906
        %v915 = vunpack.c.l.b16 %v907
        %v916 = vunpack.c.l.b16 %v908
        %v917 = vunpack.c.l.b16 %v909
        %v918 = vpack.c.b16 %v915, %v914
        %v919 = vpack.c.b16 %v917, %v916
        %v921 = vsel %vm524, %v918, 0
        %v924 = vsel %vm524, %v919, 0
        %926 = vmatprep.subr.bf16.mxu0 0
        %927 = vmatpush1.bf16.msra.mxu0 0
        %928 = vmatprep.subr.bf16.mxu0 0
        %929 = vmatpush1.bf16.msra.mxu0 0
        %930 = vmatprep.subr.bf16.mxu0 0
        %931 = vmatpush1.bf16.msra.mxu0 0
        %932 = vmatprep.subr.bf16.mxu0 0
        %933 = vmatpush1.bf16.msra.mxu0 0
        %934 = vmatprep.subr.bf16.mxu0 0
        %935 = vmatpush1.bf16.msra.mxu0 0
        %936 = vmatprep.subr.bf16.mxu0 0
        %937 = vmatpush1.bf16.msra.mxu0 0
        %938 = vmatprep.subr.bf16.mxu0 %v519
        %939 = vmatpush1.bf16.msra.mxu0 %v518
        %940 = vmatprep.subr.bf16.mxu0 %v517
        %941 = vmatpush1.bf16.msra.mxu0 %v516
        %942 = vmatprep.subr.bf16.mxu0 0
        %943 = vmatpush2.bf16.msra.mxu0 0
        %944 = vmatprep.subr.bf16.mxu0 0
        %945 = vmatpush2.bf16.msra.mxu0 0
        %946 = vmatprep.subr.bf16.mxu0 0
        %947 = vmatpush2.bf16.msra.mxu0 0
        %948 = vmatprep.subr.bf16.mxu0 0
        %949 = vmatpush2.bf16.msra.mxu0 0
        %950 = vmatprep.subr.bf16.mxu0 0
        %951 = vmatpush2.bf16.msra.mxu0 0
        %952 = vmatprep.subr.bf16.mxu0 0
        %953 = vmatpush2.bf16.msra.mxu0 0
        %954 = vmatprep.subr.bf16.mxu0 0
        %955 = vmatpush2.bf16.msra.mxu0 0
        %956 = vmatprep.subr.bf16.mxu0 0
        %957 = vmatpush2.bf16.msra.mxu0 0
        %958 = vmatprep.mubr.bf16.mxu0 0
        %959 = vmatmul.mubr.bf16.gmra.mxu0 %v921
        %v960 = vpop.f32.mrf.mxu0
        %v961 = vadd.f32 0.0, %v960
        %v962 = vpop.f32.mrf.mxu0
        %v963 = vadd.f32 0.0, %v962
        %v964 = vpop.f32.mrf.mxu0
        %v965 = vadd.f32 0.0, %v964
        %v966 = vpop.f32.mrf.mxu0
        %v967 = vadd.f32 0.0, %v966
        %968 = vmatprep.mubr.bf16.mxu0 0
        %969 = vmatmul.mubr.bf16.gmra.mxu0 %v924
        %v970 = vpop.f32.mrf.mxu0
        %v971 = vadd.f32 0.0, %v970
        %v972 = vpop.f32.mrf.mxu0
        %v973 = vadd.f32 0.0, %v972
        %v974 = vpop.f32.mrf.mxu0
        %v975 = vadd.f32 0.0, %v974
        %v976 = vpop.f32.mrf.mxu0
        %v977 = vadd.f32 0.0, %v976
        %978 = vdwg.mxu0
        %v983 = vunpack.c.l.b16 %v902
        %v984 = vunpack.c.l.b16 %v903
        %v985 = vunpack.c.l.b16 %v904
        %v986 = vunpack.c.l.b16 %v905
        %v987 = vpack.c.b16 %v984, %v983
        %v988 = vpack.c.b16 %v986, %v985
        %v990 = vsel %vm524, %v987, 0
        %v993 = vsel %vm524, %v988, 0
        %995 = vmatprep.subr.bf16.mxu0 0
        %996 = vmatpush1.bf16.msra.mxu0 0
        %997 = vmatprep.subr.bf16.mxu0 0
        %998 = vmatpush1.bf16.msra.mxu0 0
        %999 = vmatprep.subr.bf16.mxu0 0
        %1000 = vmatpush1.bf16.msra.mxu0 0
        %1001 = vmatprep.subr.bf16.mxu0 0
        %1002 = vmatpush1.bf16.msra.mxu0 0
        %1003 = vmatprep.subr.bf16.mxu0 0
        %1004 = vmatpush1.bf16.msra.mxu0 0
        %1005 = vmatprep.subr.bf16.mxu0 0
        %1006 = vmatpush1.bf16.msra.mxu0 0
        %1007 = vmatprep.subr.bf16.mxu0 %v901
        %1008 = vmatpush1.bf16.msra.mxu0 %v900
        %1009 = vmatprep.subr.bf16.mxu0 %v899
        %1010 = vmatpush1.bf16.msra.mxu0 %v898
        %1011 = vmatprep.subr.bf16.mxu0 0
        %1012 = vmatpush2.bf16.msra.mxu0 0
        %1013 = vmatprep.subr.bf16.mxu0 0
        %1014 = vmatpush2.bf16.msra.mxu0 0
        %1015 = vmatprep.subr.bf16.mxu0 0
        %1016 = vmatpush2.bf16.msra.mxu0 0
        %1017 = vmatprep.subr.bf16.mxu0 0
        %1018 = vmatpush2.bf16.msra.mxu0 0
        %1019 = vmatprep.subr.bf16.mxu0 0
        %1020 = vmatpush2.bf16.msra.mxu0 0
        %1021 = vmatprep.subr.bf16.mxu0 0
        %1022 = vmatpush2.bf16.msra.mxu0 0
        %1023 = vmatprep.subr.bf16.mxu0 0
        %1024 = vmatpush2.bf16.msra.mxu0 0
        %1025 = vmatprep.subr.bf16.mxu0 0
        %1026 = vmatpush2.bf16.msra.mxu0 0
        %1027 = vmatprep.mubr.bf16.mxu0 0
        %1028 = vmatmul.mubr.bf16.gmra.mxu0 %v990
        %v1029 = vpop.f32.mrf.mxu0
        %v1030 = vadd.f32 %v961, %v1029
        %v1031 = vpop.f32.mrf.mxu0
        %v1032 = vadd.f32 %v963, %v1031
        %v1033 = vpop.f32.mrf.mxu0
        %v1034 = vadd.f32 %v965, %v1033
        %v1035 = vpop.f32.mrf.mxu0
        %v1036 = vadd.f32 %v967, %v1035
        %1037 = vmatprep.mubr.bf16.mxu0 0
        %1038 = vmatmul.mubr.bf16.gmra.mxu0 %v993
        %v1039 = vpop.f32.mrf.mxu0
        %v1040 = vadd.f32 %v971, %v1039
        %v1041 = vpop.f32.mrf.mxu0
        %v1042 = vadd.f32 %v973, %v1041
        %v1043 = vpop.f32.mrf.mxu0
        %v1044 = vadd.f32 %v975, %v1043
        %v1045 = vpop.f32.mrf.mxu0
        %v1046 = vadd.f32 %v977, %v1045
        %1047 = vdwg.mxu0
        %v1048 = vld [vmem:[%s11] sm:$0xff]
        %v1049 = vld [vmem:[%s11 + $0x8] sm:$0xff]
        %v1050 = vld [vmem:[%s11 + $0x10] sm:$0xff]
        %v1051 = vld [vmem:[%s11 + $0x18] sm:$0xff]
        %1053 = vset.pattern.permute.xlu0 0
        %1054 = vperm.xlu0 %1053, %v1048
        %v1055 = vpop.permute.xlu0 %1054
        %1058 = vset.pattern.permute.xlu0 0
        %1059 = vperm.xlu0 %1058, %v1049
        %v1060 = vpop.permute.xlu0 %1059
        %1063 = vset.pattern.permute.xlu0 0
        %1064 = vperm.xlu0 %1063, %v1050
        %v1065 = vpop.permute.xlu0 %1064
        %1068 = vset.pattern.permute.xlu0 0
        %1069 = vperm.xlu0 %1068, %v1051
        %v1070 = vpop.permute.xlu0 %1069
        %v1072 = vadd.f32 %v1030, %v1055
        %v1073 = vadd.f32 %v1032, %v1055
        %v1074 = vadd.f32 %v1034, %v1060
        %v1075 = vadd.f32 %v1036, %v1060
        %v1076 = vadd.f32 %v1040, %v1065
        %v1077 = vadd.f32 %v1042, %v1065
        %v1078 = vadd.f32 %v1044, %v1070
        %v1079 = vadd.f32 %v1046, %v1070
        %v1080 = vmax.f32 %v1072, 0.0
        %v1081 = vmax.f32 %v1073, 0.0
        %v1082 = vmax.f32 %v1074, 0.0
        %v1083 = vmax.f32 %v1075, 0.0
        %v1084 = vmax.f32 %v1076, 0.0
        %v1085 = vmax.f32 %v1077, 0.0
        %v1086 = vmax.f32 %v1078, 0.0
        %v1087 = vmax.f32 %v1079, 0.0
        %1088 = vst [vmem:[%s459] sm:$0xff] %v1080
        %1089 = vst [vmem:[%s459 + $0x8] sm:$0xff] %v1081
        %1090 = vst [vmem:[%s459 + $0x10] sm:$0xff] %v1082
        %1091 = vst [vmem:[%s459 + $0x18] sm:$0xff] %v1083
        %1092 = vst [vmem:[%s459 + $0x20] sm:$0xff] %v1084
        %1093 = vst [vmem:[%s459 + $0x28] sm:$0xff] %v1085
        %1094 = vst [vmem:[%s459 + $0x30] sm:$0xff] %v1086
        %1095 = vst [vmem:[%s459 + $0x38] sm:$0xff] %v1087
        %s1096 = sand.u32 %s317, 1
        %s1097 = scalar_lea.sflag [#allocation3], %s1096
        %s1098 = sand.u32 %s317, 1
        %s1099 = smul.addr %s1098, 64
        %s1100 = scalar_lea.vmem [#allocation2], %s1099
        // Predicated region
        $region69: #{tpu_custom_call.1} parent=67 // pred_check
          %p1101 = pneg %p327
        $region70: #{tpu_custom_call.1} parent=67 // pred_check_branch
          %1103 = sbr.rel (%p1101) target = $region72
        $region71: #{tpu_custom_call.1} parent=67 // pred_region
          %s1104 = smul.u32 2, %s31
          %s1106 = ssub.s32 1024, 1024
          %1107 = vsyncadd %s1097, %s1106
          %s1108 = smul.addr %s30, 8
          %s1109 = sadd.s32 %s1104, %s1108
          %s1110 = smul.addr %s1109, 128
          %s1111 = scalar_lea.hbm %s12, %s1110
          %s1112 = sshll.u32 %s1100, 4
          %s1113 = int_to_ptr.vmem [resolvable:$true] %s1112
          %1118 = dma.vmem_to_hbm [thread:$0]  %s1113, 1024, %s1111, %s1097, 256, 256, 16
        $region72: #{tpu_custom_call.1} parent=67 // pred_fallthru
          _
      $region68: #{tpu_custom_call.1} parent=5 // pred_fallthru
        _
      %p1119 = scmp.le.s32.totalorder 2, %s21
      // Predicated region
      $region73: #{tpu_custom_call.1} parent=5 // pred_check
        %p1120 = pneg %p1119
      $region74: #{tpu_custom_call.1} parent=5 // pred_check_branch
        %1122 = sbr.rel (%p1120) target = $region76
      $region75: #{tpu_custom_call.1} parent=5 // pred_region
        %s1123 = ssub.s32 %s21, 2
        // Predicated region
        $region77: #{tpu_custom_call.1} parent=75 // pred_check
          %p1124 = pneg %p333
        $region78: #{tpu_custom_call.1} parent=75 // pred_check_branch
          %1126 = sbr.rel (%p1124) target = $region80
        $region79: #{tpu_custom_call.1} parent=75 // pred_region
          %s1127 = sand.u32 %s318, 1
          %s1128 = scalar_lea.sflag [#allocation3], %s1127
          %s1129 = sand.u32 %s318, 1
          %s1130 = smul.addr %s1129, 64
          %s1131 = scalar_lea.vmem [#allocation2], %s1130
          %1132 = dma.done %s1128, 1024
        $region80: #{tpu_custom_call.1} parent=75 // pred_fallthru
          _
      $region76: #{tpu_custom_call.1} parent=5 // pred_fallthru
        _
    $region6: #{tpu_custom_call.1} parent=1 // loop_footer
      %s25 = sadd.s32 1, %s21
    $region7: #{tpu_custom_call.1} parent=1 // loop_footer_branch
      %20 = sbr.rel target = $region3
    $region8: #{tpu_custom_call.1} parent=1 // loop_exit
      _
    %1133 = vsyncpa [#allocation3], 1
    %s1134 = scalar_lea.sflag [#allocation3], 1
    %1135 = vsyncpa %s1134, 1

</llo_original>
